<compile_context>
chip_gen: v5e
topology: v5e:2x2
jax: 0.10.0
libtpu: 0.0.40
codegen_flags: <defaults>
</compile_context>

<pallas_src>
import functools

import jax
import jax.numpy as jnp
import numpy as np
from jax import lax
from jax.experimental import pallas as pl
from jax.experimental.pallas import tpu as pltpu


def _round_up(x, m):
    return (x + m - 1) // m * m


# ----------------------------- Pallas kernels ------------------------------ #
def _fused_unet_kernel(x_ref, wd_ref, wu_ref, y_ref, s1_ref, s2_ref, hp_ref,
                       *, ho, wo, neg_slope):
    """LeakyReLU -> Conv2d(4,2,1) -> ReLU -> ConvTranspose2d(4,2,1) + BN stats.

    x_ref  : (1, ho+1, wo+1, 4*cin)  parity space-to-depth of the padded input
    wd_ref : (16*cin, kpad)          down-conv weight, 4 taps concatenated on K
    wu_ref : (4*kpad, 4*cout)        up-conv weight, 4 taps on K, 4 parities on N
    y_ref  : (1, ho*wo, 4*cout)      unnormalized output, (ry,rx,co) on the lanes
    s1_ref : (1, 1, 4*cout)          per-image per-packed-column sum
    s2_ref : (1, 1, 4*cout)          per-image per-packed-column sum of squares
    hp_ref : VMEM scratch (ho+2, wo+2, kpad): ReLU(h) with a zero halo.
    """
    x = x_ref[0]
    x = jnp.where(x > 0, x, neg_slope * x)                     # LeakyReLU(0.2)

    # ---- down conv: single GEMM, K = 4 taps x 4*cin ----
    kx = x.shape[-1]
    xbig = jnp.concatenate(
        [x[a:a + ho, b:b + wo, :].reshape(ho * wo, kx)
         for a in range(2) for b in range(2)], axis=1)          # (ho*wo, 16cin)
    h = jnp.dot(xbig, wd_ref[...], preferred_element_type=jnp.float32)
    h = jnp.maximum(h, 0.0)                                     # fused up-ReLU

    # ---- h stays in VMEM (zero halo); it is never written to HBM ----
    kpad = hp_ref.shape[-1]
    hp_ref[...] = jnp.zeros_like(hp_ref)
    hp_ref[1:ho + 1, 1:wo + 1, :] = h.reshape(ho, wo, kpad).astype(hp_ref.dtype)

    # ---- transposed conv: ONE GEMM over the (ho+1)x(wo+1) super-window ----
    # z[u, v, (ry,rx,co)] = sum_{a,b,ci} hp[u+a, v+b, ci] * Wup[(a,b,ci),(ry,rx,co)]
    mu = (ho + 1) * (wo + 1)
    hbig = jnp.concatenate(
        [hp_ref[a:a + ho + 1, b:b + wo + 1, :].reshape(mu, kpad)
         for a in range(2) for b in range(2)], axis=1)          # (mu, 4*kpad)
    z = jnp.dot(hbig, wu_ref[...], preferred_element_type=jnp.float32)
    co4 = z.shape[-1]
    cout = co4 // 4
    z = z.reshape(ho + 1, wo + 1, co4)

    # valid (ho, wo) window of each parity; pack (ry, rx, co) on the lane axis
    ypk = jnp.concatenate(
        [z[ry:ry + ho, rx:rx + wo,
           (2 * ry + rx) * cout:(2 * ry + rx + 1) * cout]
         for ry in range(2) for rx in range(2)],
        axis=-1).reshape(ho * wo, co4)

    y_ref[0] = ypk.astype(y_ref.dtype)
    s1_ref[0] = jnp.sum(ypk, axis=0, keepdims=True)
    s2_ref[0] = jnp.sum(ypk * ypk, axis=0, keepdims=True)


def _scale_shift_kernel(y_ref, scale_ref, shift_ref, o_ref):
    """Tiled BatchNorm apply: o = y * scale + shift (per packed channel)."""
    o_ref[...] = (y_ref[...] * scale_ref[...] + shift_ref[...]).astype(o_ref.dtype)


# ------------------------------- JAX glue ---------------------------------- #
def _space_to_depth_parity(xpad):
    """(N, 2A, 2B, C) -> (N, A, B, 4C); last dim ordered (py, px, c)."""
    n, hh, ww, c = xpad.shape
    a, b = hh // 2, ww // 2
    x6 = xpad.reshape(n, a, 2, b, 2, c)
    x6 = jnp.transpose(x6, (0, 1, 3, 2, 4, 5))
    return x6.reshape(n, a, b, 4 * c)


def _down_weight_big(w_down, kpad, dtype):
    """Conv2d weight (inner, cin, 4, 4) -> ((a,b,py,px,c)=16*cin, kpad)."""
    inner, cin = w_down.shape[:2]
    w6 = w_down.reshape(inner, cin, 2, 2, 2, 2)         # (co, c, a, py, b, px)
    w6 = jnp.transpose(w6, (2, 4, 3, 5, 1, 0))           # (a, b, py, px, c, co)
    w = w6.reshape(16 * cin, inner)
    w = jnp.pad(w, ((0, 0), (0, kpad - inner)))
    return w.astype(dtype)


def _up_weight_big(w_up, kpad, dtype):
    """ConvTranspose2d weight (inner, outer, 4, 4) ->
    ((a,b,ci)=4*kpad, (ry,rx,co)=4*outer), spatially flipped."""
    inner, outer = w_up.shape[:2]
    wf = w_up[:, :, ::-1, ::-1]
    w6 = wf.reshape(inner, outer, 2, 2, 2, 2)            # (ci, co, a, ry, b, rx)
    w6 = jnp.transpose(w6, (2, 4, 0, 3, 5, 1))            # (a, b, ci, ry, rx, co)
    w = w6.reshape(4, inner, 4 * outer)
    w = jnp.pad(w, ((0, 0), (0, kpad - inner), (0, 0)))
    return w.reshape(4 * kpad, 4 * outer).astype(dtype)


def unet_innermost_forward(x_nchw, params, *, compute_dtype=jnp.float32, eps=1e-5):
    n, cin, hh, ww = x_nchw.shape
    assert hh % 2 == 0 and ww % 2 == 0
    ho, wo = hh // 2, ww // 2
    inner_nc = params["w_down"].shape[0]
    outer_nc = params["w_up"].shape[1]
    sub = 16 if compute_dtype == jnp.bfloat16 else 8      # sublane multiple only
    kpad = _round_up(inner_nc, sub)
    co4 = 4 * outer_nc

    cparams = pltpu.CompilerParams(
        dimension_semantics=("parallel",),
        vmem_limit_bytes=32 * 1024 * 1024,   # safe on v5e/v6e/v7x; working set is tiny
    )

    # ---- input prep (one cheap XLA pass over the small, unpadded input) ----
    x_nhwc = jnp.transpose(x_nchw, (0, 2, 3, 1))
    xpad = jnp.pad(x_nhwc, ((0, 0), (1, 1), (1, 1), (0, 0)))
    xs2d = _space_to_depth_parity(xpad).astype(compute_dtype)  # (n, ho+1, wo+1, 4cin)

    w_down = _down_weight_big(params["w_down"], kpad, compute_dtype)
    w_up = _up_weight_big(params["w_up"], kpad, compute_dtype)

    # TODO(synk): for large H,W (>=256) add a spatial grid axis (with a 1-row h
    # halo per tile, marked "parallel") so the per-image working set fits v7x's
    # 64 MiB VMEM; at demo shapes one image per grid step is far below limits.
    y_pk, s1, s2 = pl.pallas_call(
        functools.partial(_fused_unet_kernel, ho=ho, wo=wo, neg_slope=0.2),
        out_shape=(
            jax.ShapeDtypeStruct((n, ho * wo, co4), jnp.float32),
            jax.ShapeDtypeStruct((n, 1, co4), jnp.float32),
            jax.ShapeDtypeStruct((n, 1, co4), jnp.float32),
        ),
        grid=(n,),
        in_specs=[
            pl.BlockSpec((1, ho + 1, wo + 1, 4 * cin), lambda i: (i, 0, 0, 0)),
            pl.BlockSpec((16 * cin, kpad), lambda i: (0, 0)),
            pl.BlockSpec((4 * kpad, co4), lambda i: (0, 0)),
        ],
        out_specs=(
            pl.BlockSpec((1, ho * wo, co4), lambda i: (i, 0, 0)),
            pl.BlockSpec((1, 1, co4), lambda i: (i, 0, 0)),
            pl.BlockSpec((1, 1, co4), lambda i: (i, 0, 0)),
        ),
        scratch_shapes=[pltpu.VMEM((ho + 2, wo + 2, kpad), compute_dtype)],
        compiler_params=cparams,
    )(xs2d, w_down, w_up)

    # ---- BatchNorm2d (train-mode batch stats, biased variance) ----
    cnt = jnp.float32(n * hh * ww)
    mean = jnp.sum(s1.reshape(n, 4, outer_nc), axis=(0, 1)) / cnt
    var = jnp.maximum(
        jnp.sum(s2.reshape(n, 4, outer_nc), axis=(0, 1)) / cnt - mean * mean, 0.0)
    gamma = params["bn_gamma"].astype(jnp.float32)
    beta = params["bn_beta"].astype(jnp.float32)
    scale = gamma * lax.rsqrt(var + eps)
    shift = beta - mean * scale
    scale4 = jnp.tile(scale, 4).reshape(1, co4)   # broadcast over the 4 parities
    shift4 = jnp.tile(shift, 4).reshape(1, co4)

    # ---- BN apply over the packed, UNPADDED y ----
    m = n * ho * wo
    tm = min(1024, m)
    y2d = pl.pallas_call(
        _scale_shift_kernel,
        out_shape=jax.ShapeDtypeStruct((m, co4), jnp.float32),
        grid=(pl.cdiv(m, tm),),
        in_specs=[
            pl.BlockSpec((tm, co4), lambda i: (i, 0)),
            pl.BlockSpec((1, co4), lambda i: (0, 0)),
            pl.BlockSpec((1, co4), lambda i: (0, 0)),
        ],
        out_specs=pl.BlockSpec((tm, co4), lambda i: (i, 0)),
        compiler_params=cparams,
    )(y_pk.reshape(m, co4), scale4, shift4)

    # ---- pixel shuffle + skip concat, directly in NCHW, real channels only ----
    y = y2d.reshape(n, ho, wo, 2, 2, outer_nc)            # (n, q, p, ry, rx, c)
    y = jnp.transpose(y, (0, 5, 1, 3, 2, 4)).reshape(n, outer_nc, hh, ww)
    return jnp.concatenate([x_nchw, y.astype(x_nchw.dtype)], axis=1)


# --------------------------- pure-JAX reference ----------------------------- #
def reference(x_nchw, params):
    x = jnp.transpose(x_nchw, (0, 2, 3, 1))
    xa = jnp.where(x > 0, x, 0.2 * x)
    w_down_hwio = jnp.transpose(params["w_down"], (2, 3, 1, 0))
    h = lax.conv_general_dilated(
        xa, w_down_hwio, (2, 2), ((1, 1), (1, 1)),
        dimension_numbers=("NHWC", "HWIO", "NHWC"),
    )
    ha = jnp.maximum(h, 0.0)
    w_t = params["w_up"]
    w_up_hwio = jnp.transpose(w_t[:, :, ::-1, ::-1], (2, 3, 0, 1))
    y = lax.conv_general_dilated(
        ha, w_up_hwio, (1, 1), ((2, 2), (2, 2)), lhs_dilation=(2, 2),
        dimension_numbers=("NHWC", "HWIO", "NHWC"),
    )
    mean = jnp.mean(y, axis=(0, 1, 2), keepdims=True)
    var = jnp.mean((y - mean) ** 2, axis=(0, 1, 2), keepdims=True)
    y = (y - mean) * lax.rsqrt(var + 1e-5) * params["bn_gamma"] + params["bn_beta"]
    y_nchw = jnp.transpose(y, (0, 3, 1, 2))
    return jnp.concatenate([x_nchw, y_nchw], axis=1)


if __name__ == "__main__":
    key = jax.random.PRNGKey(0)
    N, outer_nc, inner_nc, H, W = 2, 4, 8, 16, 16
    input_nc = outer_nc  # module default: input_nc = outer_nc when None
    k1, k2, k3, k4, k5 = jax.random.split(key, 5)
    params = {
        # Conv2d(input_nc, inner_nc, 4, 2, 1, bias=False): (out, in, kH, kW)
        "w_down": 0.1 * jax.random.normal(k1, (inner_nc, input_nc, 4, 4), jnp.float32),
        # ConvTranspose2d(inner_nc, outer_nc, 4, 2, 1, bias=False): (in, out, kH, kW)
        "w_up": 0.1 * jax.random.normal(k2, (inner_nc, outer_nc, 4, 4), jnp.float32),
        "bn_gamma": jax.random.normal(k3, (outer_nc,), jnp.float32),
        "bn_beta": jax.random.normal(k4, (outer_nc,), jnp.float32),
    }
    x = jax.random.normal(k5, (N, input_nc, H, W), jnp.float32)

    ref = reference(x, params)

    # f32 path: tight correctness check.
    out = jax.jit(unet_innermost_forward)(x, params)
    out = jax.block_until_ready(out)
    assert out.shape == (N, input_nc + outer_nc, H, W), out.shape
    np.testing.assert_allclose(np.asarray(out), np.asarray(ref), rtol=1e-4, atol=1e-4)

    # bf16 GEMM operands (f32 accumulate) for v6e/v7x: loose sanity check only.
    out_bf16 = jax.jit(
        functools.partial(unet_innermost_forward, compute_dtype=jnp.bfloat16)
    )(x, params)
    out_bf16 = jax.block_until_ready(out_bf16)
    assert out_bf16.shape == out.shape
    assert np.isfinite(np.asarray(out_bf16)).all()
    assert float(np.max(np.abs(np.asarray(out_bf16) - np.asarray(ref)))) < 0.5

    print("KERNEL_OK")
</pallas_src>

<mosaic_0001>
module attributes {stable_mosaic.version = 11 : i64} {
  func.func @_fused_unet_kernel(%arg0: i32, %arg1: memref<1x9x9x16xf32, #tpu.memory_space<vmem>>, %arg2: memref<64x8xf32, #tpu.memory_space<vmem>>, %arg3: memref<32x16xf32, #tpu.memory_space<vmem>>, %arg4: memref<1x64x16xf32, #tpu.memory_space<vmem>>, %arg5: memref<1x1x16xf32, #tpu.memory_space<vmem>>, %arg6: memref<1x1x16xf32, #tpu.memory_space<vmem>>, %arg7: memref<10x10x8xf32, #tpu.memory_space<vmem>>) attributes {dimension_semantics = [#tpu.dimension_semantics<parallel>], iteration_bounds = array<i64: 2>, scalar_prefetch = 0 : i64, scratch_operands = 1 : i64, tpu.core_type = #tpu.core_type<tc>, window_params = [{transform_indices = @transform_0, window_bounds = array<i64: 1, 9, 9, 16>}, {pipeline_mode = #tpu.pipeline_mode<synchronous>, transform_indices = @transform_1, window_bounds = array<i64: 64, 8>}, {pipeline_mode = #tpu.pipeline_mode<synchronous>, transform_indices = @transform_2, window_bounds = array<i64: 32, 16>}, {transform_indices = @transform_3, window_bounds = array<i64: 1, 64, 16>}, {transform_indices = @transform_4, window_bounds = array<i64: 1, 1, 16>}, {transform_indices = @transform_5, window_bounds = array<i64: 1, 1, 16>}]} {
    %c0 = arith.constant 0 : index
    %c0_0 = arith.constant 0 : index
    %c0_1 = arith.constant 0 : index
    %c0_2 = arith.constant 0 : index
    %0 = vector.load %arg1[%c0, %c0_0, %c0_1, %c0_2] : memref<1x9x9x16xf32, #tpu.memory_space<vmem>>, vector<1x9x9x16xf32>
    %1 = vector.shape_cast %0 : vector<1x9x9x16xf32> to vector<9x9x16xf32>
    %cst = arith.constant 0.000000e+00 : f32
    %2 = vector.broadcast %cst : f32 to vector<9x9x16xf32>
    %3 = arith.cmpf ogt, %1, %2 : vector<9x9x16xf32>
    %cst_3 = arith.constant 2.000000e-01 : f32
    %4 = vector.broadcast %cst_3 : f32 to vector<9x9x16xf32>
    %5 = arith.mulf %4, %1 : vector<9x9x16xf32>
    %6 = arith.select %3, %1, %5 : vector<9x9x16xi1>, vector<9x9x16xf32>
    %7 = vector.extract_strided_slice %6 {offsets = [0, 0, 0], sizes = [8, 8, 16], strides = [1, 1, 1]} : vector<9x9x16xf32> to vector<8x8x16xf32>
    %8 = vector.shape_cast %7 : vector<8x8x16xf32> to vector<64x16xf32>
    %9 = vector.extract_strided_slice %6 {offsets = [0, 1, 0], sizes = [8, 8, 16], strides = [1, 1, 1]} : vector<9x9x16xf32> to vector<8x8x16xf32>
    %10 = vector.shape_cast %9 : vector<8x8x16xf32> to vector<64x16xf32>
    %11 = vector.extract_strided_slice %6 {offsets = [1, 0, 0], sizes = [8, 8, 16], strides = [1, 1, 1]} : vector<9x9x16xf32> to vector<8x8x16xf32>
    %12 = vector.shape_cast %11 : vector<8x8x16xf32> to vector<64x16xf32>
    %13 = vector.extract_strided_slice %6 {offsets = [1, 1, 0], sizes = [8, 8, 16], strides = [1, 1, 1]} : vector<9x9x16xf32> to vector<8x8x16xf32>
    %14 = vector.shape_cast %13 : vector<8x8x16xf32> to vector<64x16xf32>
    %15 = tpu.concatenate %8, %10, %12, %14 in 1 : vector<64x16xf32>, vector<64x16xf32>, vector<64x16xf32>, vector<64x16xf32> -> vector<64x64xf32>
    %c0_4 = arith.constant 0 : index
    %c0_5 = arith.constant 0 : index
    %16 = vector.load %arg2[%c0_4, %c0_5] : memref<64x8xf32, #tpu.memory_space<vmem>>, vector<64x8xf32>
    %cst_6 = arith.constant dense<0.000000e+00> : vector<64x8xf32>
    %17 = tpu.matmul %15, %16, %cst_6 {dimension_numbers = #tpu.dot_dimension_numbers<[1], [0], [0], [1], [0, 0, 1, 1], [], []>} : vector<64x64xf32>, vector<64x8xf32>, vector<64x8xf32> -> vector<64x8xf32>
    %cst_7 = arith.constant 0.000000e+00 : f32
    %18 = vector.broadcast %cst_7 : f32 to vector<64x8xf32>
    %19 = arith.maximumf %17, %18 : vector<64x8xf32>
    %cst_8 = arith.constant 0.000000e+00 : f32
    %20 = vector.broadcast %cst_8 : f32 to vector<10x10x8xf32>
    %c0_9 = arith.constant 0 : index
    %c0_10 = arith.constant 0 : index
    %c0_11 = arith.constant 0 : index
    %21 = vector.load %arg7[%c0_9, %c0_10, %c0_11] : memref<10x10x8xf32, #tpu.memory_space<vmem>>, vector<10x10x8xf32>
    tpu.vector_store %arg7[%c0_9, %c0_10, %c0_11], %20 {strides = array<i32>} : memref<10x10x8xf32, #tpu.memory_space<vmem>>, vector<10x10x8xf32>,
    %22 = vector.shape_cast %19 : vector<64x8xf32> to vector<8x8x8xf32>
    %c1 = arith.constant 1 : index
    %c1_12 = arith.constant 1 : index
    %c0_13 = arith.constant 0 : index
    %23 = vector.load %arg7[%c1, %c1_12, %c0_13] : memref<10x10x8xf32, #tpu.memory_space<vmem>>, vector<8x8x8xf32>
    tpu.vector_store %arg7[%c1, %c1_12, %c0_13], %22 {strides = array<i32>} : memref<10x10x8xf32, #tpu.memory_space<vmem>>, vector<8x8x8xf32>,
    %c0_14 = arith.constant 0 : index
    %c0_15 = arith.constant 0 : index
    %c0_16 = arith.constant 0 : index
    %24 = vector.load %arg7[%c0_14, %c0_15, %c0_16] : memref<10x10x8xf32, #tpu.memory_space<vmem>>, vector<9x9x8xf32>
    %25 = vector.shape_cast %24 : vector<9x9x8xf32> to vector<81x8xf32>
    %c0_17 = arith.constant 0 : index
    %c1_18 = arith.constant 1 : index
    %c0_19 = arith.constant 0 : index
    %26 = vector.load %arg7[%c0_17, %c1_18, %c0_19] : memref<10x10x8xf32, #tpu.memory_space<vmem>>, vector<9x9x8xf32>
    %27 = vector.shape_cast %26 : vector<9x9x8xf32> to vector<81x8xf32>
    %c1_20 = arith.constant 1 : index
    %c0_21 = arith.constant 0 : index
    %c0_22 = arith.constant 0 : index
    %28 = vector.load %arg7[%c1_20, %c0_21, %c0_22] : memref<10x10x8xf32, #tpu.memory_space<vmem>>, vector<9x9x8xf32>
    %29 = vector.shape_cast %28 : vector<9x9x8xf32> to vector<81x8xf32>
    %c1_23 = arith.constant 1 : index
    %c1_24 = arith.constant 1 : index
    %c0_25 = arith.constant 0 : index
    %30 = vector.load %arg7[%c1_23, %c1_24, %c0_25] : memref<10x10x8xf32, #tpu.memory_space<vmem>>, vector<9x9x8xf32>
    %31 = vector.shape_cast %30 : vector<9x9x8xf32> to vector<81x8xf32>
    %32 = tpu.concatenate %25, %27, %29, %31 in 1 : vector<81x8xf32>, vector<81x8xf32>, vector<81x8xf32>, vector<81x8xf32> -> vector<81x32xf32>
    %c0_26 = arith.constant 0 : index
    %c0_27 = arith.constant 0 : index
    %33 = vector.load %arg3[%c0_26, %c0_27] : memref<32x16xf32, #tpu.memory_space<vmem>>, vector<32x16xf32>
    %cst_28 = arith.constant dense<0.000000e+00> : vector<81x16xf32>
    %34 = tpu.matmul %32, %33, %cst_28 {dimension_numbers = #tpu.dot_dimension_numbers<[1], [0], [0], [1], [0, 0, 1, 1], [], []>} : vector<81x32xf32>, vector<32x16xf32>, vector<81x16xf32> -> vector<81x16xf32>
    %35 = vector.shape_cast %34 : vector<81x16xf32> to vector<9x9x16xf32>
    %36 = vector.extract_strided_slice %35 {offsets = [0, 0, 0], sizes = [8, 8, 4], strides = [1, 1, 1]} : vector<9x9x16xf32> to vector<8x8x4xf32>
    %37 = vector.extract_strided_slice %35 {offsets = [0, 1, 4], sizes = [8, 8, 4], strides = [1, 1, 1]} : vector<9x9x16xf32> to vector<8x8x4xf32>
    %38 = vector.extract_strided_slice %35 {offsets = [1, 0, 8], sizes = [8, 8, 4], strides = [1, 1, 1]} : vector<9x9x16xf32> to vector<8x8x4xf32>
    %39 = vector.extract_strided_slice %35 {offsets = [1, 1, 12], sizes = [8, 8, 4], strides = [1, 1, 1]} : vector<9x9x16xf32> to vector<8x8x4xf32>
    %40 = tpu.concatenate %36, %37, %38, %39 in 2 : vector<8x8x4xf32>, vector<8x8x4xf32>, vector<8x8x4xf32>, vector<8x8x4xf32> -> vector<8x8x16xf32>
    %41 = vector.shape_cast %40 : vector<8x8x16xf32> to vector<64x16xf32>
    %c0_29 = arith.constant 0 : index
    %c0_30 = arith.constant 0 : index
    %c0_31 = arith.constant 0 : index
    %42 = vector.load %arg4[%c0_29, %c0_30, %c0_31] : memref<1x64x16xf32, #tpu.memory_space<vmem>>, vector<1x64x16xf32>
    %43 = vector.shape_cast %42 : vector<1x64x16xf32> to vector<64x16xf32>
    %44 = vector.shape_cast %41 : vector<64x16xf32> to vector<1x64x16xf32>
    tpu.vector_store %arg4[%c0_29, %c0_30, %c0_31], %44 {strides = array<i32>} : memref<1x64x16xf32, #tpu.memory_space<vmem>>, vector<1x64x16xf32>,
    %cst_32 = arith.constant dense<0.000000e+00> : vector<16xf32>
    %45 = vector.multi_reduction <add>, %41, %cst_32 [0] : vector<64x16xf32> to vector<16xf32>
    %46 = vector.shape_cast %45 : vector<16xf32> to vector<1x16xf32>
    %c0_33 = arith.constant 0 : index
    %c0_34 = arith.constant 0 : index
    %c0_35 = arith.constant 0 : index
    %47 = vector.load %arg5[%c0_33, %c0_34, %c0_35] : memref<1x1x16xf32, #tpu.memory_space<vmem>>, vector<1x1x16xf32>
    %48 = vector.shape_cast %47 : vector<1x1x16xf32> to vector<1x16xf32>
    %49 = vector.shape_cast %46 : vector<1x16xf32> to vector<1x1x16xf32>
    tpu.vector_store %arg5[%c0_33, %c0_34, %c0_35], %49 {strides = array<i32>} : memref<1x1x16xf32, #tpu.memory_space<vmem>>, vector<1x1x16xf32>,
    %50 = arith.mulf %41, %41 : vector<64x16xf32>
    %cst_36 = arith.constant dense<0.000000e+00> : vector<16xf32>
    %51 = vector.multi_reduction <add>, %50, %cst_36 [0] : vector<64x16xf32> to vector<16xf32>
    %52 = vector.shape_cast %51 : vector<16xf32> to vector<1x16xf32>
    %c0_37 = arith.constant 0 : index
    %c0_38 = arith.constant 0 : index
    %c0_39 = arith.constant 0 : index
    %53 = vector.load %arg6[%c0_37, %c0_38, %c0_39] : memref<1x1x16xf32, #tpu.memory_space<vmem>>, vector<1x1x16xf32>
    %54 = vector.shape_cast %53 : vector<1x1x16xf32> to vector<1x16xf32>
    %55 = vector.shape_cast %52 : vector<1x16xf32> to vector<1x1x16xf32>
    tpu.vector_store %arg6[%c0_37, %c0_38, %c0_39], %55 {strides = array<i32>} : memref<1x1x16xf32, #tpu.memory_space<vmem>>, vector<1x1x16xf32>,
    return
  }
  func.func @transform_0(%arg0: i32) -> (i32, i32, i32, i32) {
    %c0_i32 = arith.constant 0 : i32
    %c0_i32_0 = arith.constant 0 : i32
    %c0_i32_1 = arith.constant 0 : i32
    %c0_i32_2 = arith.constant 0 : i32
    return %arg0, %c0_i32, %c0_i32_0, %c0_i32_1 : i32, i32, i32, i32
  }
  func.func @transform_1(%arg0: i32) -> (i32, i32) {
    %c0_i32 = arith.constant 0 : i32
    %c0_i32_0 = arith.constant 0 : i32
    %c0_i32_1 = arith.constant 0 : i32
    return %c0_i32, %c0_i32_0 : i32, i32
  }
  func.func @transform_2(%arg0: i32) -> (i32, i32) {
    %c0_i32 = arith.constant 0 : i32
    %c0_i32_0 = arith.constant 0 : i32
    %c0_i32_1 = arith.constant 0 : i32
    return %c0_i32, %c0_i32_0 : i32, i32
  }
  func.func @transform_3(%arg0: i32) -> (i32, i32, i32) {
    %c0_i32 = arith.constant 0 : i32
    %c0_i32_0 = arith.constant 0 : i32
    %c0_i32_1 = arith.constant 0 : i32
    return %arg0, %c0_i32, %c0_i32_0 : i32, i32, i32
  }
  func.func @transform_4(%arg0: i32) -> (i32, i32, i32) {
    %c0_i32 = arith.constant 0 : i32
    %c0_i32_0 = arith.constant 0 : i32
    %c0_i32_1 = arith.constant 0 : i32
    return %arg0, %c0_i32, %c0_i32_0 : i32, i32, i32
  }
  func.func @transform_5(%arg0: i32) -> (i32, i32, i32) {
    %c0_i32 = arith.constant 0 : i32
    %c0_i32_0 = arith.constant 0 : i32
    %c0_i32_1 = arith.constant 0 : i32
    return %arg0, %c0_i32, %c0_i32_0 : i32, i32, i32
  }
}

module attributes {stable_mosaic.version = 11 : i64} {
  func.func @_scale_shift_kernel(%arg0: i32, %arg1: memref<128x16xf32, #tpu.memory_space<vmem>>, %arg2: memref<1x16xf32, #tpu.memory_space<vmem>>, %arg3: memref<1x16xf32, #tpu.memory_space<vmem>>, %arg4: memref<128x16xf32, #tpu.memory_space<vmem>>) attributes {dimension_semantics = [#tpu.dimension_semantics<parallel>], iteration_bounds = array<i64: 1>, scalar_prefetch = 0 : i64, scratch_operands = 0 : i64, tpu.core_type = #tpu.core_type<tc>, window_params = [{transform_indices = @transform_0, window_bounds = array<i64: 128, 16>}, {pipeline_mode = #tpu.pipeline_mode<synchronous>, transform_indices = @transform_1, window_bounds = array<i64: 1, 16>}, {pipeline_mode = #tpu.pipeline_mode<synchronous>, transform_indices = @transform_2, window_bounds = array<i64: 1, 16>}, {transform_indices = @transform_3, window_bounds = array<i64: 128, 16>}]} {
    %c0 = arith.constant 0 : index
    %c0_0 = arith.constant 0 : index
    %0 = vector.load %arg1[%c0, %c0_0] : memref<128x16xf32, #tpu.memory_space<vmem>>, vector<128x16xf32>
    %c0_1 = arith.constant 0 : index
    %c0_2 = arith.constant 0 : index
    %1 = vector.load %arg2[%c0_1, %c0_2] : memref<1x16xf32, #tpu.memory_space<vmem>>, vector<1x16xf32>
    %2 = vector.broadcast %1 : vector<1x16xf32> to vector<128x16xf32>
    %3 = arith.mulf %0, %2 : vector<128x16xf32>
    %c0_3 = arith.constant 0 : index
    %c0_4 = arith.constant 0 : index
    %4 = vector.load %arg3[%c0_3, %c0_4] : memref<1x16xf32, #tpu.memory_space<vmem>>, vector<1x16xf32>
    %5 = vector.broadcast %4 : vector<1x16xf32> to vector<128x16xf32>
    %6 = arith.addf %3, %5 : vector<128x16xf32>
    %c0_5 = arith.constant 0 : index
    %c0_6 = arith.constant 0 : index
    %7 = vector.load %arg4[%c0_5, %c0_6] : memref<128x16xf32, #tpu.memory_space<vmem>>, vector<128x16xf32>
    tpu.vector_store %arg4[%c0_5, %c0_6], %6 {strides = array<i32>} : memref<128x16xf32, #tpu.memory_space<vmem>>, vector<128x16xf32>,
    return
  }
  func.func @transform_0(%arg0: i32) -> (i32, i32) {
    %c0_i32 = arith.constant 0 : i32
    %c0_i32_0 = arith.constant 0 : i32
    return %arg0, %c0_i32 : i32, i32
  }
  func.func @transform_1(%arg0: i32) -> (i32, i32) {
    %c0_i32 = arith.constant 0 : i32
    %c0_i32_0 = arith.constant 0 : i32
    %c0_i32_1 = arith.constant 0 : i32
    return %c0_i32, %c0_i32_0 : i32, i32
  }
  func.func @transform_2(%arg0: i32) -> (i32, i32) {
    %c0_i32 = arith.constant 0 : i32
    %c0_i32_0 = arith.constant 0 : i32
    %c0_i32_1 = arith.constant 0 : i32
    return %c0_i32, %c0_i32_0 : i32, i32
  }
  func.func @transform_3(%arg0: i32) -> (i32, i32) {
    %c0_i32 = arith.constant 0 : i32
    %c0_i32_0 = arith.constant 0 : i32
    return %arg0, %c0_i32 : i32, i32
  }
}

</mosaic_0001>

<llo_original>
// kernel: tile.18
$region0: #{tile.18}
  #allocation0 [shape = 's32[1]{0}', space=sflag, size = 0x4, scoped, tag = 'scoped memory for tile.18']
  %s0 = inlined_call_operand.vmem [shape: f32[4], index: 0, kind: input, shape index: {}]
  %s1 = inlined_call_operand.vmem [shape: f32[4,4], index: 1, kind: output, shape index: {}]
  // Predicated region
  $region2: #{tile.18} parent=0 // pred_check
    _
  $region3: #{tile.18} parent=0 // pred_check_branch
    %3 = sbr.rel (0) target = $region5
  $region4: #{tile.18} parent=0 // pred_region
    _
  $region5: #{tile.18} parent=0 // pred_fallthru
    _
  %v4 = vld [vmem:[%s0] ss:$0 sm:$0xff]
  %5 = vst [vmem:[%s1] sm:$0xf] %v4

// kernel: tile.19
$region0: #{tile.19}
  %s0 = inlined_call_operand.vmem [shape: f32[4,4], index: 0, kind: input, shape index: {}]
  %s1 = inlined_call_operand.vmem [shape: f32[1,16], index: 1, kind: output, shape index: {}]
  $region1: #{tile.19} parent=0
    #allocation0 [shape = 'u8[4096]{0}', space=vmem, size = 0x1000, scoped, tag = 'scoped mem for output reshape']
    #allocation1 [shape = 'u8[4096]{0}', space=vmem, size = 0x1000, scoped, tag = 'scoped mem for input reshape']
    %s3 = ssub.s32 16, 1
    %v4 = vld [vmem:[%s0] sm:%s3]
    %5 = vst [vmem:[#allocation1] sm:%s3] %v4
    %v6 = vld [vmem:[#allocation1] sm:$0x1]
    %vm7 = vcmask 31744
    %8 = vst.msk [vmem:[#allocation0] sm:$0x1] %vm7, %v6
    %s9 = scalar_lea.vmem [#allocation1], 3
    %v10 = vld [vmem:[%s9] sm:$0x1]
    %11 = vrot.lane.b32.xlu0 %v10, 12
    %v12 = vpop.permute.xlu0 %11
    %vm13 = vcmask 130144
    %14 = vst.msk [vmem:[#allocation0] sm:$0x1] %vm13, %v12
    %s15 = scalar_lea.vmem [#allocation1], 2
    %v16 = vld [vmem:[%s15] sm:$0x1]
    %17 = vrot.lane.b32.xlu0 %v16, 8
    %v18 = vpop.permute.xlu0 %17
    %vm19 = vcmask 97344
    %20 = vst.msk [vmem:[#allocation0] sm:$0x1] %vm19, %v18
    %s21 = scalar_lea.vmem [#allocation1], 1
    %v22 = vld [vmem:[%s21] sm:$0x1]
    %23 = vrot.lane.b32.xlu0 %v22, 4
    %v24 = vpop.permute.xlu0 %23
    %vm25 = vcmask 64544
    %26 = vst.msk [vmem:[#allocation0] sm:$0x1] %vm25, %v24
    %s28 = ssub.s32 2, 1
    %v29 = vld [vmem:[#allocation0] sm:%s28]
    %s31 = ssub.s32 2, 1
    %32 = vst [vmem:[%s1] sm:%s31] %v29

// kernel: unet_innermost_forward.3
$region0: #{unet_innermost_forward.3}
  #allocation0 [shape = 'u32[]', space=smem, size = 0x4, offset = 0x4, fixed_abs, tag = 'smem constant byte address 0x4 - core index']
  #allocation1 [shape = 'u32[72,128]{1,0:T(1,128)}', space=vmem, size = 0x9000, scoped, tag = 'internal scratch']
  %s0 = inlined_call_operand.vmem [shape: f32[128,16], index: 0, kind: input, shape index: {}]
  %s1 = inlined_call_operand.vmem [shape: f32[1,16], index: 1, kind: input, shape index: {}]
  %s2 = inlined_call_operand.vmem [shape: f32[1,16], index: 2, kind: input, shape index: {}]
  %s3 = inlined_call_operand.vmem [shape: f32[128,16], index: 3, kind: output, shape index: {}]
  %s4 = sld [smem:[#allocation0]]
  $region22: #{unet_innermost_forward.3} parent=0
    _
  %s6 = ssub.s32 1, %s4
  %s7 = scalar_select 0, %s6, %s4
  // Predicated region
  $region2: #{unet_innermost_forward.3} parent=0 // pred_check
    _
  $region3: #{unet_innermost_forward.3} parent=0 // pred_check_branch
    %9 = sbr.rel (0) target = $region5
  $region4: #{unet_innermost_forward.3} parent=0 // pred_region
    _
  $region5: #{unet_innermost_forward.3} parent=0 // pred_fallthru
    _
  // Predicated region
  $region6: #{unet_innermost_forward.3} parent=0 // pred_check
    _
  $region7: #{unet_innermost_forward.3} parent=0 // pred_check_branch
    %11 = sbr.rel (0) target = $region9
  $region8: #{unet_innermost_forward.3} parent=0 // pred_region
    _
  $region9: #{unet_innermost_forward.3} parent=0 // pred_fallthru
    _
  // Predicated region
  $region10: #{unet_innermost_forward.3} parent=0 // pred_check
    _
  $region11: #{unet_innermost_forward.3} parent=0 // pred_check_branch
    %13 = sbr.rel (0) target = $region13
  $region12: #{unet_innermost_forward.3} parent=0 // pred_region
    _
  $region13: #{unet_innermost_forward.3} parent=0 // pred_fallthru
    _
  %v14 = vld [vmem:[%s0] sm:$0xff]
  %v15 = vld [vmem:[%s0 + $0x8] sm:$0xff]
  %v16 = vld [vmem:[%s0 + $0x10] sm:$0xff]
  %v17 = vld [vmem:[%s0 + $0x18] sm:$0xff]
  %v18 = vld [vmem:[%s0 + $0x20] sm:$0xff]
  %v19 = vld [vmem:[%s0 + $0x28] sm:$0xff]
  %v20 = vld [vmem:[%s0 + $0x30] sm:$0xff]
  %v21 = vld [vmem:[%s0 + $0x38] sm:$0xff]
  %v22 = vld [vmem:[%s0 + $0x40] sm:$0xff]
  %v23 = vld [vmem:[%s0 + $0x48] sm:$0xff]
  %v24 = vld [vmem:[%s0 + $0x50] sm:$0xff]
  %v25 = vld [vmem:[%s0 + $0x58] sm:$0xff]
  %v26 = vld [vmem:[%s0 + $0x60] sm:$0xff]
  %v27 = vld [vmem:[%s0 + $0x68] sm:$0xff]
  %v28 = vld [vmem:[%s0 + $0x70] sm:$0xff]
  %v29 = vld [vmem:[%s0 + $0x78] sm:$0xff]
  %v30 = vld [vmem:[%s1] sm:$0x1]
  %v32 = vperm.slane %v30, 0
  %v34 = vmul.f32 %v14, %v32
  %v35 = vmul.f32 %v15, %v32
  %v36 = vmul.f32 %v16, %v32
  %v37 = vmul.f32 %v17, %v32
  %v38 = vmul.f32 %v18, %v32
  %v39 = vmul.f32 %v19, %v32
  %v40 = vmul.f32 %v20, %v32
  %v41 = vmul.f32 %v21, %v32
  %v42 = vmul.f32 %v22, %v32
  %v43 = vmul.f32 %v23, %v32
  %v44 = vmul.f32 %v24, %v32
  %v45 = vmul.f32 %v25, %v32
  %v46 = vmul.f32 %v26, %v32
  %v47 = vmul.f32 %v27, %v32
  %v48 = vmul.f32 %v28, %v32
  %v49 = vmul.f32 %v29, %v32
  %v50 = vld [vmem:[%s2] sm:$0x1]
  %v52 = vperm.slane %v50, 0
  %v54 = vadd.f32 %v34, %v52
  %v55 = vadd.f32 %v35, %v52
  %v56 = vadd.f32 %v36, %v52
  %v57 = vadd.f32 %v37, %v52
  %v58 = vadd.f32 %v38, %v52
  %v59 = vadd.f32 %v39, %v52
  %v60 = vadd.f32 %v40, %v52
  %v61 = vadd.f32 %v41, %v52
  %v62 = vadd.f32 %v42, %v52
  %v63 = vadd.f32 %v43, %v52
  %v64 = vadd.f32 %v44, %v52
  %v65 = vadd.f32 %v45, %v52
  %v66 = vadd.f32 %v46, %v52
  %v67 = vadd.f32 %v47, %v52
  %v68 = vadd.f32 %v48, %v52
  %v69 = vadd.f32 %v49, %v52
  %vm70 = vcmask 130048
  %71 = vst.msk [vmem:[%s3] sm:$0xff] %vm70, %v54
  %72 = vst.msk [vmem:[%s3 + $0x8] sm:$0xff] %vm70, %v55
  %73 = vst.msk [vmem:[%s3 + $0x10] sm:$0xff] %vm70, %v56
  %74 = vst.msk [vmem:[%s3 + $0x18] sm:$0xff] %vm70, %v57
  %75 = vst.msk [vmem:[%s3 + $0x20] sm:$0xff] %vm70, %v58
  %76 = vst.msk [vmem:[%s3 + $0x28] sm:$0xff] %vm70, %v59
  %77 = vst.msk [vmem:[%s3 + $0x30] sm:$0xff] %vm70, %v60
  %78 = vst.msk [vmem:[%s3 + $0x38] sm:$0xff] %vm70, %v61
  %79 = vst.msk [vmem:[%s3 + $0x40] sm:$0xff] %vm70, %v62
  %80 = vst.msk [vmem:[%s3 + $0x48] sm:$0xff] %vm70, %v63
  %81 = vst.msk [vmem:[%s3 + $0x50] sm:$0xff] %vm70, %v64
  %82 = vst.msk [vmem:[%s3 + $0x58] sm:$0xff] %vm70, %v65
  %83 = vst.msk [vmem:[%s3 + $0x60] sm:$0xff] %vm70, %v66
  %84 = vst.msk [vmem:[%s3 + $0x68] sm:$0xff] %vm70, %v67
  %85 = vst.msk [vmem:[%s3 + $0x70] sm:$0xff] %vm70, %v68
  %86 = vst.msk [vmem:[%s3 + $0x78] sm:$0xff] %vm70, %v69
  // Predicated region
  $region14: #{unet_innermost_forward.3} parent=0 // pred_check
    _
  $region15: #{unet_innermost_forward.3} parent=0 // pred_check_branch
    %88 = sbr.rel (0) target = $region17
  $region16: #{unet_innermost_forward.3} parent=0 // pred_region
    _
  $region17: #{unet_innermost_forward.3} parent=0 // pred_fallthru
    _
  // Predicated region
  $region18: #{unet_innermost_forward.3} parent=0 // pred_check
    _
  $region19: #{unet_innermost_forward.3} parent=0 // pred_check_branch
    %90 = sbr.rel (0) target = $region21
  $region20: #{unet_innermost_forward.3} parent=0 // pred_region
    _
  $region21: #{unet_innermost_forward.3} parent=0 // pred_fallthru
    _

// kernel: unet_innermost_forward.2
$region0: #{unet_innermost_forward.2}
  #allocation0 [shape = 'u32[]', space=smem, size = 0x4, offset = 0x4, fixed_abs, tag = 'smem constant byte address 0x4 - core index']
  #allocation1 [shape = 'u32[72,128]{1,0:T(1,128)}', space=vmem, size = 0x9000, scoped, tag = 'internal scratch']
  #allocation2 [shape = 'f32[10,10,8]{2,1,0:T(8,128)}', space=vmem, size = 0x14000, scoped, tag = 'scratch operand']
  %s0 = inlined_call_operand.vmem [shape: f32[2,9,9,16], index: 0, kind: input, shape index: {}]
  %s1 = inlined_call_operand.vmem [shape: f32[64,8], index: 1, kind: input, shape index: {}]
  %s2 = inlined_call_operand.vmem [shape: f32[32,16], index: 2, kind: input, shape index: {}]
  %s3 = inlined_call_operand.vmem [shape: f32[2,64,16], index: 3, kind: output, shape index: {0}]
  %s4 = inlined_call_operand.vmem [shape: f32[2,1,16], index: 4, kind: output, shape index: {1}]
  %s5 = inlined_call_operand.vmem [shape: f32[2,1,16], index: 5, kind: output, shape index: {2}]
  %6 = xla_tuple %s3, %s4, %s5
  %s7 = sld [smem:[#allocation0]]
  $region61: #{unet_innermost_forward.2} parent=0
    _
  %s9 = ssub.s32 1, %s7
  %s10 = scalar_select 0, %s9, %s7
  loop: start=0, step=1, limit=4
  $region2: #{unet_innermost_forward.2} parent=0 // loop_pre_header
    _
  $region3: #{unet_innermost_forward.2} parent=0 // loop_header
    %s12 = sphi 0, %s16
    %p13 = scmp.ge.s32.totalorder %s12, 4
    %s22 = sphi 0, %s24
    %s25 = sphi 0, %s22
    %s26 = sphi 0, %s25
    %s42 = sphi 0, %s26
    %s46 = sphi 0, %s46
    %s48 = sphi 0, %s46
    %s49 = sphi 0, %s48
    %s63 = sphi 0, %s49
    %s67 = sphi 0, %s67
    %s69 = sphi 0, %s67
    %s70 = sphi 0, %s69
    %s84 = sphi 0, %s70
    %s90 = sphi 0, %s92
    %s93 = sphi 0, %s90
    %s94 = sphi 0, %s93
    %s110 = sphi 0, %s94
    %s116 = sphi 0, %s118
    %s119 = sphi 0, %s116
    %s120 = sphi 0, %s119
    %s136 = sphi 0, %s120
    %s142 = sphi 0, %s144
    %s145 = sphi 0, %s142
    %s146 = sphi 0, %s145
    %s162 = sphi 0, %s146
  $region4: #{unet_innermost_forward.2} parent=0 // loop_header_branch
    %15 = sbr.rel (%p13) target = $region8
  $region5: #{unet_innermost_forward.2} parent=0 // loop_body
    %s17 = ssub.s32 %s12, 1
    %s18 = ssub.s32 %s12, 2
    %s19 = sadd.s32 %s12, 1
    %s20 = ssub.s32 %s12, %s19
    %p21 = scmp.eq.s32.totalorder %s20, 0
    %s23 = sadd.s32 %s22, 1
    %s24 = scalar_select %p21, %s22, %s23
    %p27 = pneg %p21
    %p28 = scmp.eq.s32.totalorder %s12, 1
    %p29 = por %p27, %p28
    %p30 = scmp.ne.s32.totalorder %s22, %s25
    %p31 = scmp.eq.s32.totalorder %s12, 0
    %p32 = por %p30, %p31
    %p33 = scmp.ne.s32.totalorder %s22, %s25
    %p34 = scmp.eq.s32.totalorder %s17, 1
    %p35 = por %p33, %p34
    %p36 = scmp.ne.s32.totalorder %s25, %s26
    %p37 = scmp.eq.s32.totalorder %s17, 0
    %p38 = por %p36, %p37
    %p39 = scmp.ne.s32.totalorder %s25, %s26
    %p40 = scmp.eq.s32.totalorder %s18, 1
    %p41 = por %p39, %p40
    %p43 = scmp.ne.s32.totalorder %s26, %s42
    %p44 = scmp.eq.s32.totalorder %s18, 0
    %p45 = por %p43, %p44
    %s47 = sadd.s32 %s46, 1
    %p50 = scmp.eq.s32.totalorder %s12, 1
    %p51 = scmp.ne.s32.totalorder %s46, %s48
    %p52 = scmp.eq.s32.totalorder %s12, 0
    %p53 = por %p51, %p52
    %p54 = scmp.ne.s32.totalorder %s46, %s48
    %p55 = scmp.eq.s32.totalorder %s17, 1
    %p56 = por %p54, %p55
    %p57 = scmp.ne.s32.totalorder %s48, %s49
    %p58 = scmp.eq.s32.totalorder %s17, 0
    %p59 = por %p57, %p58
    %p60 = scmp.ne.s32.totalorder %s48, %s49
    %p61 = scmp.eq.s32.totalorder %s18, 1
    %p62 = por %p60, %p61
    %p64 = scmp.ne.s32.totalorder %s49, %s63
    %p65 = scmp.eq.s32.totalorder %s18, 0
    %p66 = por %p64, %p65
    %s68 = sadd.s32 %s67, 1
    %p71 = scmp.eq.s32.totalorder %s12, 1
    %p72 = scmp.ne.s32.totalorder %s67, %s69
    %p73 = scmp.eq.s32.totalorder %s12, 0
    %p74 = por %p72, %p73
    %p75 = scmp.ne.s32.totalorder %s67, %s69
    %p76 = scmp.eq.s32.totalorder %s17, 1
    %p77 = por %p75, %p76
    %p78 = scmp.ne.s32.totalorder %s69, %s70
    %p79 = scmp.eq.s32.totalorder %s17, 0
    %p80 = por %p78, %p79
    %p81 = scmp.ne.s32.totalorder %s69, %s70
    %p82 = scmp.eq.s32.totalorder %s18, 1
    %p83 = por %p81, %p82
    %p85 = scmp.ne.s32.totalorder %s70, %s84
    %p86 = scmp.eq.s32.totalorder %s18, 0
    %p87 = por %p85, %p86
    %s88 = ssub.s32 %s12, %s19
    %p89 = scmp.eq.s32.totalorder %s88, 0
    %s91 = sadd.s32 %s90, 1
    %s92 = scalar_select %p89, %s90, %s91
    %p95 = pneg %p89
    %p96 = scmp.eq.s32.totalorder %s12, 1
    %p97 = por %p95, %p96
    %p98 = scmp.ne.s32.totalorder %s90, %s93
    %p99 = scmp.eq.s32.totalorder %s12, 0
    %p100 = por %p98, %p99
    %p101 = scmp.ne.s32.totalorder %s90, %s93
    %p102 = scmp.eq.s32.totalorder %s17, 1
    %p103 = por %p101, %p102
    %p104 = scmp.ne.s32.totalorder %s93, %s94
    %p105 = scmp.eq.s32.totalorder %s17, 0
    %p106 = por %p104, %p105
    %p107 = scmp.ne.s32.totalorder %s93, %s94
    %p108 = scmp.eq.s32.totalorder %s18, 1
    %p109 = por %p107, %p108
    %p111 = scmp.ne.s32.totalorder %s94, %s110
    %p112 = scmp.eq.s32.totalorder %s18, 0
    %p113 = por %p111, %p112
    %s114 = ssub.s32 %s12, %s19
    %p115 = scmp.eq.s32.totalorder %s114, 0
    %s117 = sadd.s32 %s116, 1
    %s118 = scalar_select %p115, %s116, %s117
    %p121 = pneg %p115
    %p122 = scmp.eq.s32.totalorder %s12, 1
    %p123 = por %p121, %p122
    %p124 = scmp.ne.s32.totalorder %s116, %s119
    %p125 = scmp.eq.s32.totalorder %s12, 0
    %p126 = por %p124, %p125
    %p127 = scmp.ne.s32.totalorder %s116, %s119
    %p128 = scmp.eq.s32.totalorder %s17, 1
    %p129 = por %p127, %p128
    %p130 = scmp.ne.s32.totalorder %s119, %s120
    %p131 = scmp.eq.s32.totalorder %s17, 0
    %p132 = por %p130, %p131
    %p133 = scmp.ne.s32.totalorder %s119, %s120
    %p134 = scmp.eq.s32.totalorder %s18, 1
    %p135 = por %p133, %p134
    %p137 = scmp.ne.s32.totalorder %s120, %s136
    %p138 = scmp.eq.s32.totalorder %s18, 0
    %p139 = por %p137, %p138
    %s140 = ssub.s32 %s12, %s19
    %p141 = scmp.eq.s32.totalorder %s140, 0
    %s143 = sadd.s32 %s142, 1
    %s144 = scalar_select %p141, %s142, %s143
    %p147 = pneg %p141
    %p148 = scmp.eq.s32.totalorder %s12, 1
    %p149 = por %p147, %p148
    %p150 = scmp.ne.s32.totalorder %s142, %s145
    %p151 = scmp.eq.s32.totalorder %s12, 0
    %p152 = por %p150, %p151
    %p153 = scmp.ne.s32.totalorder %s142, %s145
    %p154 = scmp.eq.s32.totalorder %s17, 1
    %p155 = por %p153, %p154
    %p156 = scmp.ne.s32.totalorder %s145, %s146
    %p157 = scmp.eq.s32.totalorder %s17, 0
    %p158 = por %p156, %p157
    %p159 = scmp.ne.s32.totalorder %s145, %s146
    %p160 = scmp.eq.s32.totalorder %s18, 1
    %p161 = por %p159, %p160
    %p163 = scmp.ne.s32.totalorder %s146, %s162
    %p164 = scmp.eq.s32.totalorder %s18, 0
    %p165 = por %p163, %p164
    %p166 = scmp.le.s32.totalorder 1, %s12
    %p167 = scmp.lt.s32.totalorder %s12, 3
    %p168 = pnand %p166, %p167
    %p169 = pneg %p168
    // Predicated region
    $region9: #{unet_innermost_forward.2} parent=5 // pred_check
      _
    $region10: #{unet_innermost_forward.2} parent=5 // pred_check_branch
      %171 = sbr.rel (%p168) target = $region12
    $region11: #{unet_innermost_forward.2} parent=5 // pred_region
      %s172 = ssub.s32 %s12, 1
      // Predicated region
      $region13: #{unet_innermost_forward.2} parent=11 // pred_check
        %p173 = pneg %p59
      $region14: #{unet_innermost_forward.2} parent=11 // pred_check_branch
        %175 = sbr.rel (%p173) target = $region16
      $region15: #{unet_innermost_forward.2} parent=11 // pred_region
        _
      $region16: #{unet_innermost_forward.2} parent=11 // pred_fallthru
        _
      // Predicated region
      $region17: #{unet_innermost_forward.2} parent=11 // pred_check
        %p176 = pneg %p80
      $region18: #{unet_innermost_forward.2} parent=11 // pred_check_branch
        %178 = sbr.rel (%p176) target = $region20
      $region19: #{unet_innermost_forward.2} parent=11 // pred_region
        _
      $region20: #{unet_innermost_forward.2} parent=11 // pred_fallthru
        _
    $region12: #{unet_innermost_forward.2} parent=5 // pred_fallthru
      _
    %p179 = scmp.lt.s32.totalorder %s12, 2
    // Predicated region
    $region21: #{unet_innermost_forward.2} parent=5 // pred_check
      %p180 = pneg %p179
    $region22: #{unet_innermost_forward.2} parent=5 // pred_check_branch
      %182 = sbr.rel (%p180) target = $region24
    $region23: #{unet_innermost_forward.2} parent=5 // pred_region
      // Predicated region
      $region25: #{unet_innermost_forward.2} parent=23 // pred_check
        %p183 = pneg %p32
      $region26: #{unet_innermost_forward.2} parent=23 // pred_check_branch
        %185 = sbr.rel (%p183) target = $region28
      $region27: #{unet_innermost_forward.2} parent=23 // pred_region
        %p186 = scmp.lt.s32.totalorder %s12, 1
        %s187 = scalar_select %p186, %s12, 1
        %s188 = smul.addr %s187, 18
        %s189 = smul.addr %s188, 8
        %s190 = scalar_lea.vmem %s0, %s189
      $region28: #{unet_innermost_forward.2} parent=23 // pred_fallthru
        _
    $region24: #{unet_innermost_forward.2} parent=5 // pred_fallthru
      _
    %p191 = scmp.le.s32.totalorder 1, %s12
    %p192 = scmp.lt.s32.totalorder %s12, 3
    %p193 = pnand %p191, %p192
    %p194 = pneg %p193
    // Predicated region
    $region29: #{unet_innermost_forward.2} parent=5 // pred_check
      _
    $region30: #{unet_innermost_forward.2} parent=5 // pred_check_branch
      %196 = sbr.rel (%p193) target = $region32
    $region31: #{unet_innermost_forward.2} parent=5 // pred_region
      %s197 = ssub.s32 %s12, 1
      %p198 = scmp.lt.s32.totalorder %s17, 1
      %s199 = scalar_select %p198, %s17, 1
      %s200 = smul.addr %s199, 18
      %s201 = smul.addr %s200, 8
      %s202 = scalar_lea.vmem %s0, %s201
      %p203 = pneg %p38
      %p204 = pneg %p35
      %p205 = pneg %p59
      %p206 = pneg %p56
      %p207 = pneg %p80
      %p208 = pneg %p77
      %p209 = pneg %p106
      %p210 = pneg %p103
      %p211 = scmp.lt.s32.totalorder %s17, 1
      %s212 = scalar_select %p211, %s17, 1
      %s213 = smul.addr %s212, 8
      %s214 = smul.addr %s213, 8
      %s215 = scalar_lea.vmem %s3, %s214
      %p216 = pneg %p132
      %p217 = pneg %p129
      %p218 = scmp.lt.s32.totalorder %s17, 1
      %s219 = scalar_select %p218, %s17, 1
      %s220 = scalar_lea.vmem %s4, %s219
      %p221 = pneg %p158
      %p222 = pneg %p155
      %p223 = scmp.lt.s32.totalorder %s17, 1
      %s224 = scalar_select %p223, %s17, 1
      %s225 = scalar_lea.vmem %s5, %s224
      %p226 = scmp.lt.s32.totalorder %s17, 1
      %s227 = scalar_select %p226, %s17, 1
      %s228 = smul.addr %s227, 18
      %s229 = smul.addr %s228, 8
      %s230 = scalar_lea.vmem %s0, %s229
      %p231 = scmp.lt.s32.totalorder %s17, 1
      %s232 = scalar_select %p231, %s17, 1
      %s233 = smul.addr %s232, 8
      %s234 = smul.addr %s233, 8
      %s235 = scalar_lea.vmem %s3, %s234
      %p236 = scmp.lt.s32.totalorder %s17, 1
      %s237 = scalar_select %p236, %s17, 1
      %s238 = scalar_lea.vmem %s4, %s237
      %p239 = scmp.lt.s32.totalorder %s17, 1
      %s240 = scalar_select %p239, %s17, 1
      %s241 = scalar_lea.vmem %s5, %s240
      %v242 = vld [vmem:[%s230] sm:$0xff]
      %v243 = vld [vmem:[%s230 + $0x8] sm:$0x1]
      %v244 = vld [vmem:[%s230 + $0x10] sm:$0xff]
      %v245 = vld [vmem:[%s230 + $0x18] sm:$0x1]
      %v246 = vld [vmem:[%s230 + $0x20] sm:$0xff]
      %v247 = vld [vmem:[%s230 + $0x28] sm:$0x1]
      %v248 = vld [vmem:[%s230 + $0x30] sm:$0xff]
      %v249 = vld [vmem:[%s230 + $0x38] sm:$0x1]
      %v250 = vld [vmem:[%s230 + $0x40] sm:$0xff]
      %v251 = vld [vmem:[%s230 + $0x48] sm:$0x1]
      %v252 = vld [vmem:[%s230 + $0x50] sm:$0xff]
      %v253 = vld [vmem:[%s230 + $0x58] sm:$0x1]
      %v254 = vld [vmem:[%s230 + $0x60] sm:$0xff]
      %v255 = vld [vmem:[%s230 + $0x68] sm:$0x1]
      %v256 = vld [vmem:[%s230 + $0x70] sm:$0xff]
      %v257 = vld [vmem:[%s230 + $0x78] sm:$0x1]
      %v258 = vld [vmem:[%s230 + $0x80] sm:$0xff]
      %v259 = vld [vmem:[%s230 + $0x88] sm:$0x1]
      %vm260 = vcmp.gt.f32.partialorder %v242, 0.0
      %vm261 = vcmp.gt.f32.partialorder %v243, 0.0
      %vm262 = vcmp.gt.f32.partialorder %v244, 0.0
      %vm263 = vcmp.gt.f32.partialorder %v245, 0.0
      %vm264 = vcmp.gt.f32.partialorder %v246, 0.0
      %vm265 = vcmp.gt.f32.partialorder %v247, 0.0
      %vm266 = vcmp.gt.f32.partialorder %v248, 0.0
      %vm267 = vcmp.gt.f32.partialorder %v249, 0.0
      %vm268 = vcmp.gt.f32.partialorder %v250, 0.0
      %vm269 = vcmp.gt.f32.partialorder %v251, 0.0
      %vm270 = vcmp.gt.f32.partialorder %v252, 0.0
      %vm271 = vcmp.gt.f32.partialorder %v253, 0.0
      %vm272 = vcmp.gt.f32.partialorder %v254, 0.0
      %vm273 = vcmp.gt.f32.partialorder %v255, 0.0
      %vm274 = vcmp.gt.f32.partialorder %v256, 0.0
      %vm275 = vcmp.gt.f32.partialorder %v257, 0.0
      %vm276 = vcmp.gt.f32.partialorder %v258, 0.0
      %vm277 = vcmp.gt.f32.partialorder %v259, 0.0
      %v278 = vmul.f32 %v242, 0.2
      %v279 = vmul.f32 %v243, 0.2
      %v280 = vmul.f32 %v244, 0.2
      %v281 = vmul.f32 %v245, 0.2
      %v282 = vmul.f32 %v246, 0.2
      %v283 = vmul.f32 %v247, 0.2
      %v284 = vmul.f32 %v248, 0.2
      %v285 = vmul.f32 %v249, 0.2
      %v286 = vmul.f32 %v250, 0.2
      %v287 = vmul.f32 %v251, 0.2
      %v288 = vmul.f32 %v252, 0.2
      %v289 = vmul.f32 %v253, 0.2
      %v290 = vmul.f32 %v254, 0.2
      %v291 = vmul.f32 %v255, 0.2
      %v292 = vmul.f32 %v256, 0.2
      %v293 = vmul.f32 %v257, 0.2
      %v294 = vmul.f32 %v258, 0.2
      %v295 = vmul.f32 %v259, 0.2
      %v296 = vsel %vm260, %v242, %v278
      %v297 = vsel %vm261, %v243, %v279
      %v298 = vsel %vm262, %v244, %v280
      %v299 = vsel %vm263, %v245, %v281
      %v300 = vsel %vm264, %v246, %v282
      %v301 = vsel %vm265, %v247, %v283
      %v302 = vsel %vm266, %v248, %v284
      %v303 = vsel %vm267, %v249, %v285
      %v304 = vsel %vm268, %v250, %v286
      %v305 = vsel %vm269, %v251, %v287
      %v306 = vsel %vm270, %v252, %v288
      %v307 = vsel %vm271, %v253, %v289
      %v308 = vsel %vm272, %v254, %v290
      %v309 = vsel %vm273, %v255, %v291
      %v310 = vsel %vm274, %v256, %v292
      %v311 = vsel %vm275, %v257, %v293
      %v312 = vsel %vm276, %v258, %v294
      %v313 = vsel %vm277, %v259, %v295
      %vm330 = vcmask 1046528
      %v331 = vrot.slane %v296, 1
      %v332 = vrot.slane %v297, 1
      %v333 = vsel %vm330, %v331, %v332
      %v334 = vrot.slane %v298, 1
      %v335 = vrot.slane %v299, 1
      %v336 = vsel %vm330, %v334, %v335
      %v337 = vrot.slane %v300, 1
      %v338 = vrot.slane %v301, 1
      %v339 = vsel %vm330, %v337, %v338
      %v340 = vrot.slane %v302, 1
      %v341 = vrot.slane %v303, 1
      %v342 = vsel %vm330, %v340, %v341
      %v343 = vrot.slane %v304, 1
      %v344 = vrot.slane %v305, 1
      %v345 = vsel %vm330, %v343, %v344
      %v346 = vrot.slane %v306, 1
      %v347 = vrot.slane %v307, 1
      %v348 = vsel %vm330, %v346, %v347
      %v349 = vrot.slane %v308, 1
      %v350 = vrot.slane %v309, 1
      %v351 = vsel %vm330, %v349, %v350
      %v352 = vrot.slane %v310, 1
      %v353 = vrot.slane %v311, 1
      %v354 = vsel %vm330, %v352, %v353
      %v357 = vrot.slane %v312, 1
      %v358 = vrot.slane %v313, 1
      %v359 = vsel %vm330, %v357, %v358
      %360 = vrot.lane.b32.xlu0 %v333, 16
      %v361 = vpop.permute.xlu0 %360
      %362 = vrot.lane.b32.xlu0 %v336, 16
      %v363 = vpop.permute.xlu0 %362
      %364 = vrot.lane.b32.xlu0 %v339, 16
      %v365 = vpop.permute.xlu0 %364
      %366 = vrot.lane.b32.xlu0 %v342, 16
      %v367 = vpop.permute.xlu0 %366
      %368 = vrot.lane.b32.xlu0 %v345, 16
      %v369 = vpop.permute.xlu0 %368
      %370 = vrot.lane.b32.xlu0 %v348, 16
      %v371 = vpop.permute.xlu0 %370
      %372 = vrot.lane.b32.xlu0 %v351, 16
      %v373 = vpop.permute.xlu0 %372
      %374 = vrot.lane.b32.xlu0 %v354, 16
      %v375 = vpop.permute.xlu0 %374
      %384 = vrot.lane.b32.xlu0 %v298, 32
      %v385 = vpop.permute.xlu0 %384
      %386 = vrot.lane.b32.xlu0 %v300, 32
      %v387 = vpop.permute.xlu0 %386
      %388 = vrot.lane.b32.xlu0 %v302, 32
      %v389 = vpop.permute.xlu0 %388
      %390 = vrot.lane.b32.xlu0 %v304, 32
      %v391 = vpop.permute.xlu0 %390
      %392 = vrot.lane.b32.xlu0 %v306, 32
      %v393 = vpop.permute.xlu0 %392
      %394 = vrot.lane.b32.xlu0 %v308, 32
      %v395 = vpop.permute.xlu0 %394
      %396 = vrot.lane.b32.xlu0 %v310, 32
      %v397 = vpop.permute.xlu0 %396
      %398 = vrot.lane.b32.xlu0 %v312, 32
      %v399 = vpop.permute.xlu0 %398
      %408 = vrot.lane.b32.xlu0 %v336, 48
      %v409 = vpop.permute.xlu0 %408
      %410 = vrot.lane.b32.xlu0 %v339, 48
      %v411 = vpop.permute.xlu0 %410
      %412 = vrot.lane.b32.xlu0 %v342, 48
      %v413 = vpop.permute.xlu0 %412
      %414 = vrot.lane.b32.xlu0 %v345, 48
      %v415 = vpop.permute.xlu0 %414
      %416 = vrot.lane.b32.xlu0 %v348, 48
      %v417 = vpop.permute.xlu0 %416
      %418 = vrot.lane.b32.xlu0 %v351, 48
      %v419 = vpop.permute.xlu0 %418
      %420 = vrot.lane.b32.xlu0 %v354, 48
      %v421 = vpop.permute.xlu0 %420
      %422 = vrot.lane.b32.xlu0 %v359, 48
      %v423 = vpop.permute.xlu0 %422
      %vm432 = vcmask 130048
      %v433 = vsel %vm432, %v296, %v361
      %v434 = vsel %vm432, %v298, %v363
      %v435 = vsel %vm432, %v300, %v365
      %v436 = vsel %vm432, %v302, %v367
      %v437 = vsel %vm432, %v304, %v369
      %v438 = vsel %vm432, %v306, %v371
      %v439 = vsel %vm432, %v308, %v373
      %v440 = vsel %vm432, %v310, %v375
      %vm441 = vcmask 261120
      %v442 = vsel %vm441, %v433, %v385
      %v443 = vsel %vm441, %v434, %v387
      %v444 = vsel %vm441, %v435, %v389
      %v445 = vsel %vm441, %v436, %v391
      %v446 = vsel %vm441, %v437, %v393
      %v447 = vsel %vm441, %v438, %v395
      %v448 = vsel %vm441, %v439, %v397
      %v449 = vsel %vm441, %v440, %v399
      %vm450 = vcmask 392192
      %v451 = vsel %vm450, %v442, %v409
      %v452 = vsel %vm450, %v443, %v411
      %v453 = vsel %vm450, %v444, %v413
      %v454 = vsel %vm450, %v445, %v415
      %v455 = vsel %vm450, %v446, %v417
      %v456 = vsel %vm450, %v447, %v419
      %v457 = vsel %vm450, %v448, %v421
      %v458 = vsel %vm450, %v449, %v423
      %v459 = vld [vmem:[%s1] sm:$0xff]
      %v460 = vld [vmem:[%s1 + $0x8] sm:$0xff]
      %v461 = vld [vmem:[%s1 + $0x10] sm:$0xff]
      %v462 = vld [vmem:[%s1 + $0x18] sm:$0xff]
      %v463 = vld [vmem:[%s1 + $0x20] sm:$0xff]
      %v464 = vld [vmem:[%s1 + $0x28] sm:$0xff]
      %v465 = vld [vmem:[%s1 + $0x30] sm:$0xff]
      %v466 = vld [vmem:[%s1 + $0x38] sm:$0xff]
      %vm467 = vcmask 523264
      %v469 = vsel %vm467, %v451, 0
      %v472 = vsel %vm467, %v452, 0
      %v475 = vsel %vm467, %v453, 0
      %v478 = vsel %vm467, %v454, 0
      %v481 = vsel %vm467, %v455, 0
      %v484 = vsel %vm467, %v456, 0
      %v487 = vsel %vm467, %v457, 0
      %v490 = vsel %vm467, %v458, 0
      %492 = vmatpush.msra.mxu0 0.0
      %493 = vmatpush.msra.mxu0 0.0
      %494 = vmatpush.msra.mxu0 0.0
      %495 = vmatpush.msra.mxu0 0.0
      %496 = vmatpush.msra.mxu0 0.0
      %497 = vmatpush.msra.mxu0 0.0
      %498 = vmatpush.msra.mxu0 0.0
      %499 = vmatpush.msra.mxu0 0.0
      %500 = vmatpush.msra.mxu0 %v466
      %501 = vmatpush.msra.mxu0 %v465
      %502 = vmatpush.msra.mxu0 %v464
      %503 = vmatpush.msra.mxu0 %v463
      %504 = vmatpush.msra.mxu0 %v462
      %505 = vmatpush.msra.mxu0 %v461
      %506 = vmatpush.msra.mxu0 %v460
      %507 = vmatpush.msra.mxu0 %v459
      %508 = vmatmul.f32.gmra.mxu0 %v469
      %v509 = vpop.f32.mrf.mxu0
      %v510 = vadd.f32 0.0, %v509
      %511 = vmatmul.f32.gmra.mxu0 %v472
      %v512 = vpop.f32.mrf.mxu0
      %v513 = vadd.f32 0.0, %v512
      %514 = vmatmul.f32.gmra.mxu0 %v475
      %v515 = vpop.f32.mrf.mxu0
      %v516 = vadd.f32 0.0, %v515
      %517 = vmatmul.f32.gmra.mxu0 %v478
      %v518 = vpop.f32.mrf.mxu0
      %v519 = vadd.f32 0.0, %v518
      %520 = vmatmul.f32.gmra.mxu0 %v481
      %v521 = vpop.f32.mrf.mxu0
      %v522 = vadd.f32 0.0, %v521
      %523 = vmatmul.f32.gmra.mxu0 %v484
      %v524 = vpop.f32.mrf.mxu0
      %v525 = vadd.f32 0.0, %v524
      %526 = vmatmul.f32.gmra.mxu0 %v487
      %v527 = vpop.f32.mrf.mxu0
      %v528 = vadd.f32 0.0, %v527
      %529 = vmatmul.f32.gmra.mxu0 %v490
      %v530 = vpop.f32.mrf.mxu0
      %v531 = vadd.f32 0.0, %v530
      %532 = vdwg.mxu0
      %v533 = vmax.f32 %v510, 0.0
      %v534 = vmax.f32 %v513, 0.0
      %v535 = vmax.f32 %v516, 0.0
      %v536 = vmax.f32 %v519, 0.0
      %v537 = vmax.f32 %v522, 0.0
      %v538 = vmax.f32 %v525, 0.0
      %v539 = vmax.f32 %v528, 0.0
      %v540 = vmax.f32 %v531, 0.0
      %vm541 = vcmask 64512
      %542 = vst.msk [vmem:[#allocation2] sm:$0xff] %vm541, 0.0
      %vm543 = vcmask 58368
      %544 = vst.msk [vmem:[#allocation2 + $0x8] sm:$0x3] %vm543, 0.0
      %545 = vst.msk [vmem:[#allocation2 + $0x10] sm:$0xff] %vm541, 0.0
      %546 = vst.msk [vmem:[#allocation2 + $0x18] sm:$0x3] %vm543, 0.0
      %547 = vst.msk [vmem:[#allocation2 + $0x20] sm:$0xff] %vm541, 0.0
      %548 = vst.msk [vmem:[#allocation2 + $0x28] sm:$0x3] %vm543, 0.0
      %549 = vst.msk [vmem:[#allocation2 + $0x30] sm:$0xff] %vm541, 0.0
      %550 = vst.msk [vmem:[#allocation2 + $0x38] sm:$0x3] %vm543, 0.0
      %551 = vst.msk [vmem:[#allocation2 + $0x40] sm:$0xff] %vm541, 0.0
      %552 = vst.msk [vmem:[#allocation2 + $0x48] sm:$0x3] %vm543, 0.0
      %553 = vst.msk [vmem:[#allocation2 + $0x50] sm:$0xff] %vm541, 0.0
      %554 = vst.msk [vmem:[#allocation2 + $0x58] sm:$0x3] %vm543, 0.0
      %555 = vst.msk [vmem:[#allocation2 + $0x60] sm:$0xff] %vm541, 0.0
      %556 = vst.msk [vmem:[#allocation2 + $0x68] sm:$0x3] %vm543, 0.0
      %557 = vst.msk [vmem:[#allocation2 + $0x70] sm:$0xff] %vm541, 0.0
      %558 = vst.msk [vmem:[#allocation2 + $0x78] sm:$0x3] %vm543, 0.0
      %559 = vst.msk [vmem:[#allocation2 + $0x80] sm:$0xff] %vm541, 0.0
      %560 = vst.msk [vmem:[#allocation2 + $0x88] sm:$0x3] %vm543, 0.0
      %561 = vst.msk [vmem:[#allocation2 + $0x90] sm:$0xff] %vm541, 0.0
      %562 = vst.msk [vmem:[#allocation2 + $0x98] sm:$0x3] %vm543, 0.0
      %s563 = scalar_lea.vmem [#allocation2], 16
      %564 = vst.msk [vmem:[%s563 + $0x1] sm:$0xff] %vm541, %v533
      %565 = vst.msk [vmem:[%s563 + $0x11] sm:$0xff] %vm541, %v534
      %566 = vst.msk [vmem:[%s563 + $0x21] sm:$0xff] %vm541, %v535
      %567 = vst.msk [vmem:[%s563 + $0x31] sm:$0xff] %vm541, %v536
      %568 = vst.msk [vmem:[%s563 + $0x41] sm:$0xff] %vm541, %v537
      %569 = vst.msk [vmem:[%s563 + $0x51] sm:$0xff] %vm541, %v538
      %570 = vst.msk [vmem:[%s563 + $0x61] sm:$0xff] %vm541, %v539
      %571 = vst.msk [vmem:[%s563 + $0x71] sm:$0xff] %vm541, %v540
      %v572 = vld [vmem:[#allocation2] sm:$0xff]
      %v573 = vld [vmem:[#allocation2 + $0x8] sm:$0x1]
      %v574 = vld [vmem:[#allocation2 + $0x10] sm:$0xff]
      %v575 = vld [vmem:[#allocation2 + $0x18] sm:$0x1]
      %v576 = vld [vmem:[#allocation2 + $0x20] sm:$0xff]
      %v577 = vld [vmem:[#allocation2 + $0x28] sm:$0x1]
      %v578 = vld [vmem:[#allocation2 + $0x30] sm:$0xff]
      %v579 = vld [vmem:[#allocation2 + $0x38] sm:$0x1]
      %v580 = vld [vmem:[#allocation2 + $0x40] sm:$0xff]
      %v581 = vld [vmem:[#allocation2 + $0x48] sm:$0x1]
      %v582 = vld [vmem:[#allocation2 + $0x50] sm:$0xff]
      %v583 = vld [vmem:[#allocation2 + $0x58] sm:$0x1]
      %v584 = vld [vmem:[#allocation2 + $0x60] sm:$0xff]
      %v585 = vld [vmem:[#allocation2 + $0x68] sm:$0x1]
      %v586 = vld [vmem:[#allocation2 + $0x70] sm:$0xff]
      %v587 = vld [vmem:[#allocation2 + $0x78] sm:$0x1]
      %v588 = vld [vmem:[#allocation2 + $0x80] sm:$0xff]
      %v589 = vld [vmem:[#allocation2 + $0x88] sm:$0x1]
      %v608 = vrot.slane %v572, 1
      %v609 = vrot.slane %v572, 2
      %v610 = vrot.slane %v572, 3
      %v611 = vrot.slane %v572, 4
      %v612 = vrot.slane %v572, 5
      %v613 = vrot.slane %v572, 6
      %v614 = vrot.slane %v572, 7
      %v615 = vrot.slane %v574, 1
      %v616 = vrot.slane %v574, 2
      %v617 = vrot.slane %v574, 3
      %v618 = vrot.slane %v574, 4
      %v619 = vrot.slane %v574, 5
      %v620 = vrot.slane %v574, 6
      %v621 = vrot.slane %v574, 7
      %v622 = vrot.slane %v576, 1
      %v623 = vrot.slane %v576, 2
      %v624 = vrot.slane %v576, 3
      %v625 = vrot.slane %v576, 4
      %v626 = vrot.slane %v576, 5
      %v627 = vrot.slane %v576, 6
      %v628 = vrot.slane %v576, 7
      %v629 = vrot.slane %v578, 1
      %v630 = vrot.slane %v578, 2
      %v631 = vrot.slane %v578, 3
      %v632 = vrot.slane %v578, 4
      %v633 = vrot.slane %v578, 5
      %v634 = vrot.slane %v578, 6
      %v635 = vrot.slane %v578, 7
      %v636 = vrot.slane %v580, 1
      %v637 = vrot.slane %v580, 2
      %v638 = vrot.slane %v580, 3
      %v639 = vrot.slane %v580, 4
      %v640 = vrot.slane %v580, 5
      %v641 = vrot.slane %v580, 6
      %v642 = vrot.slane %v580, 7
      %v643 = vrot.slane %v582, 1
      %v644 = vrot.slane %v582, 2
      %v645 = vrot.slane %v582, 3
      %v646 = vrot.slane %v582, 4
      %v647 = vrot.slane %v582, 5
      %v648 = vrot.slane %v582, 6
      %v649 = vrot.slane %v582, 7
      %v650 = vrot.slane %v584, 1
      %v651 = vrot.slane %v584, 2
      %v652 = vrot.slane %v584, 3
      %v653 = vrot.slane %v584, 4
      %v654 = vrot.slane %v584, 5
      %v655 = vrot.slane %v584, 6
      %v656 = vrot.slane %v584, 7
      %v657 = vrot.slane %v586, 1
      %v658 = vrot.slane %v586, 2
      %v659 = vrot.slane %v586, 3
      %v660 = vrot.slane %v586, 4
      %v661 = vrot.slane %v586, 5
      %v662 = vrot.slane %v586, 6
      %v663 = vrot.slane %v586, 7
      %v664 = vrot.slane %v588, 1
      %v665 = vrot.slane %v588, 2
      %v666 = vrot.slane %v588, 3
      %v667 = vrot.slane %v588, 4
      %v668 = vrot.slane %v588, 5
      %v669 = vrot.slane %v588, 6
      %v670 = vrot.slane %v588, 7
      %v671 = vld [vmem:[#allocation2 + $0x1] sm:$0xff]
      %v672 = vld [vmem:[#allocation2 + $0x9] sm:$0x1]
      %v673 = vld [vmem:[#allocation2 + $0x11] sm:$0xff]
      %v674 = vld [vmem:[#allocation2 + $0x19] sm:$0x1]
      %v675 = vld [vmem:[#allocation2 + $0x21] sm:$0xff]
      %v676 = vld [vmem:[#allocation2 + $0x29] sm:$0x1]
      %v677 = vld [vmem:[#allocation2 + $0x31] sm:$0xff]
      %v678 = vld [vmem:[#allocation2 + $0x39] sm:$0x1]
      %v679 = vld [vmem:[#allocation2 + $0x41] sm:$0xff]
      %v680 = vld [vmem:[#allocation2 + $0x49] sm:$0x1]
      %v681 = vld [vmem:[#allocation2 + $0x51] sm:$0xff]
      %v682 = vld [vmem:[#allocation2 + $0x59] sm:$0x1]
      %v683 = vld [vmem:[#allocation2 + $0x61] sm:$0xff]
      %v684 = vld [vmem:[#allocation2 + $0x69] sm:$0x1]
      %v685 = vld [vmem:[#allocation2 + $0x71] sm:$0xff]
      %v686 = vld [vmem:[#allocation2 + $0x79] sm:$0x1]
      %v687 = vld [vmem:[#allocation2 + $0x81] sm:$0xff]
      %v688 = vld [vmem:[#allocation2 + $0x89] sm:$0x1]
      %v707 = vrot.slane %v671, 1
      %v708 = vrot.slane %v671, 2
      %v709 = vrot.slane %v671, 3
      %v710 = vrot.slane %v671, 4
      %v711 = vrot.slane %v671, 5
      %v712 = vrot.slane %v671, 6
      %v713 = vrot.slane %v671, 7
      %v714 = vrot.slane %v673, 1
      %v715 = vrot.slane %v673, 2
      %v716 = vrot.slane %v673, 3
      %v717 = vrot.slane %v673, 4
      %v718 = vrot.slane %v673, 5
      %v719 = vrot.slane %v673, 6
      %v720 = vrot.slane %v673, 7
      %v721 = vrot.slane %v675, 1
      %v722 = vrot.slane %v675, 2
      %v723 = vrot.slane %v675, 3
      %v724 = vrot.slane %v675, 4
      %v725 = vrot.slane %v675, 5
      %v726 = vrot.slane %v675, 6
      %v727 = vrot.slane %v675, 7
      %v728 = vrot.slane %v677, 1
      %v729 = vrot.slane %v677, 2
      %v730 = vrot.slane %v677, 3
      %v731 = vrot.slane %v677, 4
      %v732 = vrot.slane %v677, 5
      %v733 = vrot.slane %v677, 6
      %v734 = vrot.slane %v677, 7
      %v735 = vrot.slane %v679, 1
      %v736 = vrot.slane %v679, 2
      %v737 = vrot.slane %v679, 3
      %v738 = vrot.slane %v679, 4
      %v739 = vrot.slane %v679, 5
      %v740 = vrot.slane %v679, 6
      %v741 = vrot.slane %v679, 7
      %v742 = vrot.slane %v681, 1
      %v743 = vrot.slane %v681, 2
      %v744 = vrot.slane %v681, 3
      %v745 = vrot.slane %v681, 4
      %v746 = vrot.slane %v681, 5
      %v747 = vrot.slane %v681, 6
      %v748 = vrot.slane %v681, 7
      %v749 = vrot.slane %v683, 1
      %v750 = vrot.slane %v683, 2
      %v751 = vrot.slane %v683, 3
      %v752 = vrot.slane %v683, 4
      %v753 = vrot.slane %v683, 5
      %v754 = vrot.slane %v683, 6
      %v755 = vrot.slane %v683, 7
      %v756 = vrot.slane %v685, 1
      %v757 = vrot.slane %v685, 2
      %v758 = vrot.slane %v685, 3
      %v759 = vrot.slane %v685, 4
      %v760 = vrot.slane %v685, 5
      %v761 = vrot.slane %v685, 6
      %v762 = vrot.slane %v685, 7
      %v763 = vrot.slane %v687, 1
      %v764 = vrot.slane %v687, 2
      %v765 = vrot.slane %v687, 3
      %v766 = vrot.slane %v687, 4
      %v767 = vrot.slane %v687, 5
      %v768 = vrot.slane %v687, 6
      %v769 = vrot.slane %v687, 7
      %v770 = vld [vmem:[%s563] sm:$0xff]
      %v771 = vld [vmem:[%s563 + $0x8] sm:$0x1]
      %v772 = vld [vmem:[%s563 + $0x10] sm:$0xff]
      %v773 = vld [vmem:[%s563 + $0x18] sm:$0x1]
      %v774 = vld [vmem:[%s563 + $0x20] sm:$0xff]
      %v775 = vld [vmem:[%s563 + $0x28] sm:$0x1]
      %v776 = vld [vmem:[%s563 + $0x30] sm:$0xff]
      %v777 = vld [vmem:[%s563 + $0x38] sm:$0x1]
      %v778 = vld [vmem:[%s563 + $0x40] sm:$0xff]
      %v779 = vld [vmem:[%s563 + $0x48] sm:$0x1]
      %v780 = vld [vmem:[%s563 + $0x50] sm:$0xff]
      %v781 = vld [vmem:[%s563 + $0x58] sm:$0x1]
      %v782 = vld [vmem:[%s563 + $0x60] sm:$0xff]
      %v783 = vld [vmem:[%s563 + $0x68] sm:$0x1]
      %v784 = vld [vmem:[%s563 + $0x70] sm:$0xff]
      %v785 = vld [vmem:[%s563 + $0x78] sm:$0x1]
      %v786 = vld [vmem:[%s563 + $0x80] sm:$0xff]
      %v787 = vld [vmem:[%s563 + $0x88] sm:$0x1]
      %v806 = vrot.slane %v770, 1
      %v807 = vrot.slane %v770, 2
      %v808 = vrot.slane %v770, 3
      %v809 = vrot.slane %v770, 4
      %v810 = vrot.slane %v770, 5
      %v811 = vrot.slane %v770, 6
      %v812 = vrot.slane %v770, 7
      %v813 = vrot.slane %v772, 1
      %v814 = vrot.slane %v772, 2
      %v815 = vrot.slane %v772, 3
      %v816 = vrot.slane %v772, 4
      %v817 = vrot.slane %v772, 5
      %v818 = vrot.slane %v772, 6
      %v819 = vrot.slane %v772, 7
      %v820 = vrot.slane %v774, 1
      %v821 = vrot.slane %v774, 2
      %v822 = vrot.slane %v774, 3
      %v823 = vrot.slane %v774, 4
      %v824 = vrot.slane %v774, 5
      %v825 = vrot.slane %v774, 6
      %v826 = vrot.slane %v774, 7
      %v827 = vrot.slane %v776, 1
      %v828 = vrot.slane %v776, 2
      %v829 = vrot.slane %v776, 3
      %v830 = vrot.slane %v776, 4
      %v831 = vrot.slane %v776, 5
      %v832 = vrot.slane %v776, 6
      %v833 = vrot.slane %v776, 7
      %v834 = vrot.slane %v778, 1
      %v835 = vrot.slane %v778, 2
      %v836 = vrot.slane %v778, 3
      %v837 = vrot.slane %v778, 4
      %v838 = vrot.slane %v778, 5
      %v839 = vrot.slane %v778, 6
      %v840 = vrot.slane %v778, 7
      %v841 = vrot.slane %v780, 1
      %v842 = vrot.slane %v780, 2
      %v843 = vrot.slane %v780, 3
      %v844 = vrot.slane %v780, 4
      %v845 = vrot.slane %v780, 5
      %v846 = vrot.slane %v780, 6
      %v847 = vrot.slane %v780, 7
      %v848 = vrot.slane %v782, 1
      %v849 = vrot.slane %v782, 2
      %v850 = vrot.slane %v782, 3
      %v851 = vrot.slane %v782, 4
      %v852 = vrot.slane %v782, 5
      %v853 = vrot.slane %v782, 6
      %v854 = vrot.slane %v782, 7
      %v855 = vrot.slane %v784, 1
      %v856 = vrot.slane %v784, 2
      %v857 = vrot.slane %v784, 3
      %v858 = vrot.slane %v784, 4
      %v859 = vrot.slane %v784, 5
      %v860 = vrot.slane %v784, 6
      %v861 = vrot.slane %v784, 7
      %v862 = vrot.slane %v786, 1
      %v863 = vrot.slane %v786, 2
      %v864 = vrot.slane %v786, 3
      %v865 = vrot.slane %v786, 4
      %v866 = vrot.slane %v786, 5
      %v867 = vrot.slane %v786, 6
      %v868 = vrot.slane %v786, 7
      %v869 = vld [vmem:[%s563 + $0x1] sm:$0xff]
      %v870 = vld [vmem:[%s563 + $0x9] sm:$0x1]
      %v871 = vld [vmem:[%s563 + $0x11] sm:$0xff]
      %v872 = vld [vmem:[%s563 + $0x19] sm:$0x1]
      %v873 = vld [vmem:[%s563 + $0x21] sm:$0xff]
      %v874 = vld [vmem:[%s563 + $0x29] sm:$0x1]
      %v875 = vld [vmem:[%s563 + $0x31] sm:$0xff]
      %v876 = vld [vmem:[%s563 + $0x39] sm:$0x1]
      %v877 = vld [vmem:[%s563 + $0x41] sm:$0xff]
      %v878 = vld [vmem:[%s563 + $0x49] sm:$0x1]
      %v879 = vld [vmem:[%s563 + $0x51] sm:$0xff]
      %v880 = vld [vmem:[%s563 + $0x59] sm:$0x1]
      %v881 = vld [vmem:[%s563 + $0x61] sm:$0xff]
      %v882 = vld [vmem:[%s563 + $0x69] sm:$0x1]
      %v883 = vld [vmem:[%s563 + $0x71] sm:$0xff]
      %v884 = vld [vmem:[%s563 + $0x79] sm:$0x1]
      %v885 = vld [vmem:[%s563 + $0x81] sm:$0xff]
      %v886 = vld [vmem:[%s563 + $0x89] sm:$0x1]
      %v905 = vrot.slane %v869, 1
      %v906 = vrot.slane %v869, 2
      %v907 = vrot.slane %v869, 3
      %v908 = vrot.slane %v869, 4
      %v909 = vrot.slane %v869, 5
      %v910 = vrot.slane %v869, 6
      %v911 = vrot.slane %v869, 7
      %v912 = vrot.slane %v871, 1
      %v913 = vrot.slane %v871, 2
      %v914 = vrot.slane %v871, 3
      %v915 = vrot.slane %v871, 4
      %v916 = vrot.slane %v871, 5
      %v917 = vrot.slane %v871, 6
      %v918 = vrot.slane %v871, 7
      %v919 = vrot.slane %v873, 1
      %v920 = vrot.slane %v873, 2
      %v921 = vrot.slane %v873, 3
      %v922 = vrot.slane %v873, 4
      %v923 = vrot.slane %v873, 5
      %v924 = vrot.slane %v873, 6
      %v925 = vrot.slane %v873, 7
      %v926 = vrot.slane %v875, 1
      %v927 = vrot.slane %v875, 2
      %v928 = vrot.slane %v875, 3
      %v929 = vrot.slane %v875, 4
      %v930 = vrot.slane %v875, 5
      %v931 = vrot.slane %v875, 6
      %v932 = vrot.slane %v875, 7
      %v933 = vrot.slane %v877, 1
      %v934 = vrot.slane %v877, 2
      %v935 = vrot.slane %v877, 3
      %v936 = vrot.slane %v877, 4
      %v937 = vrot.slane %v877, 5
      %v938 = vrot.slane %v877, 6
      %v939 = vrot.slane %v877, 7
      %v940 = vrot.slane %v879, 1
      %v941 = vrot.slane %v879, 2
      %v942 = vrot.slane %v879, 3
      %v943 = vrot.slane %v879, 4
      %v944 = vrot.slane %v879, 5
      %v945 = vrot.slane %v879, 6
      %v946 = vrot.slane %v879, 7
      %v947 = vrot.slane %v881, 1
      %v948 = vrot.slane %v881, 2
      %v949 = vrot.slane %v881, 3
      %v950 = vrot.slane %v881, 4
      %v951 = vrot.slane %v881, 5
      %v952 = vrot.slane %v881, 6
      %v953 = vrot.slane %v881, 7
      %v954 = vrot.slane %v883, 1
      %v955 = vrot.slane %v883, 2
      %v956 = vrot.slane %v883, 3
      %v957 = vrot.slane %v883, 4
      %v958 = vrot.slane %v883, 5
      %v959 = vrot.slane %v883, 6
      %v960 = vrot.slane %v883, 7
      %v961 = vrot.slane %v885, 1
      %v962 = vrot.slane %v885, 2
      %v963 = vrot.slane %v885, 3
      %v964 = vrot.slane %v885, 4
      %v965 = vrot.slane %v885, 5
      %v966 = vrot.slane %v885, 6
      %v967 = vrot.slane %v885, 7
      %968 = vst [vmem:[#allocation1] ss:$9 sm:$0xff] %v572
      %s969 = scalar_lea.vmem [#allocation1], 1
      %970 = vst [vmem:[%s969] ss:$9 sm:$0xff] %v608
      %s971 = scalar_lea.vmem [#allocation1], 2
      %972 = vst [vmem:[%s971] ss:$9 sm:$0xff] %v609
      %s973 = scalar_lea.vmem [#allocation1], 3
      %974 = vst [vmem:[%s973] ss:$9 sm:$0xff] %v610
      %s975 = scalar_lea.vmem [#allocation1], 4
      %976 = vst [vmem:[%s975] ss:$9 sm:$0xff] %v611
      %s977 = scalar_lea.vmem [#allocation1], 5
      %978 = vst [vmem:[%s977] ss:$9 sm:$0xff] %v612
      %s979 = scalar_lea.vmem [#allocation1], 6
      %980 = vst [vmem:[%s979] ss:$9 sm:$0xff] %v613
      %s981 = scalar_lea.vmem [#allocation1], 7
      %982 = vst [vmem:[%s981] ss:$9 sm:$0xff] %v614
      %v983 = vld [vmem:[#allocation1] sm:$0xff]
      %984 = vst [vmem:[#allocation1] ss:$9 sm:$0xff] %v573
      %985 = vst [vmem:[%s969] ss:$9 sm:$0xff] %v574
      %986 = vst [vmem:[%s971] ss:$9 sm:$0xff] %v615
      %987 = vst [vmem:[%s973] ss:$9 sm:$0xff] %v616
      %988 = vst [vmem:[%s975] ss:$9 sm:$0xff] %v617
      %989 = vst [vmem:[%s977] ss:$9 sm:$0xff] %v618
      %990 = vst [vmem:[%s979] ss:$9 sm:$0xff] %v619
      %991 = vst [vmem:[%s981] ss:$9 sm:$0xff] %v620
      %v992 = vld [vmem:[#allocation1] sm:$0xff]
      %993 = vst [vmem:[#allocation1] ss:$9 sm:$0xff] %v621
      %994 = vst [vmem:[%s969] ss:$9 sm:$0xff] %v575
      %995 = vst [vmem:[%s971] ss:$9 sm:$0xff] %v576
      %996 = vst [vmem:[%s973] ss:$9 sm:$0xff] %v622
      %997 = vst [vmem:[%s975] ss:$9 sm:$0xff] %v623
      %998 = vst [vmem:[%s977] ss:$9 sm:$0xff] %v624
      %999 = vst [vmem:[%s979] ss:$9 sm:$0xff] %v625
      %1000 = vst [vmem:[%s981] ss:$9 sm:$0xff] %v626
      %v1001 = vld [vmem:[#allocation1] sm:$0xff]
      %1002 = vst [vmem:[#allocation1] ss:$9 sm:$0xff] %v627
      %1003 = vst [vmem:[%s969] ss:$9 sm:$0xff] %v628
      %1004 = vst [vmem:[%s971] ss:$9 sm:$0xff] %v577
      %1005 = vst [vmem:[%s973] ss:$9 sm:$0xff] %v578
      %1006 = vst [vmem:[%s975] ss:$9 sm:$0xff] %v629
      %1007 = vst [vmem:[%s977] ss:$9 sm:$0xff] %v630
      %1008 = vst [vmem:[%s979] ss:$9 sm:$0xff] %v631
      %1009 = vst [vmem:[%s981] ss:$9 sm:$0xff] %v632
      %v1010 = vld [vmem:[#allocation1] sm:$0xff]
      %1011 = vst [vmem:[#allocation1] ss:$9 sm:$0xff] %v633
      %1012 = vst [vmem:[%s969] ss:$9 sm:$0xff] %v634
      %1013 = vst [vmem:[%s971] ss:$9 sm:$0xff] %v635
      %1014 = vst [vmem:[%s973] ss:$9 sm:$0xff] %v579
      %1015 = vst [vmem:[%s975] ss:$9 sm:$0xff] %v580
      %1016 = vst [vmem:[%s977] ss:$9 sm:$0xff] %v636
      %1017 = vst [vmem:[%s979] ss:$9 sm:$0xff] %v637
      %1018 = vst [vmem:[%s981] ss:$9 sm:$0xff] %v638
      %v1019 = vld [vmem:[#allocation1] sm:$0xff]
      %1020 = vst [vmem:[#allocation1] ss:$9 sm:$0xff] %v639
      %1021 = vst [vmem:[%s969] ss:$9 sm:$0xff] %v640
      %1022 = vst [vmem:[%s971] ss:$9 sm:$0xff] %v641
      %1023 = vst [vmem:[%s973] ss:$9 sm:$0xff] %v642
      %1024 = vst [vmem:[%s975] ss:$9 sm:$0xff] %v581
      %1025 = vst [vmem:[%s977] ss:$9 sm:$0xff] %v582
      %1026 = vst [vmem:[%s979] ss:$9 sm:$0xff] %v643
      %1027 = vst [vmem:[%s981] ss:$9 sm:$0xff] %v644
      %v1028 = vld [vmem:[#allocation1] sm:$0xff]
      %1029 = vst [vmem:[#allocation1] ss:$9 sm:$0xff] %v645
      %1030 = vst [vmem:[%s969] ss:$9 sm:$0xff] %v646
      %1031 = vst [vmem:[%s971] ss:$9 sm:$0xff] %v647
      %1032 = vst [vmem:[%s973] ss:$9 sm:$0xff] %v648
      %1033 = vst [vmem:[%s975] ss:$9 sm:$0xff] %v649
      %1034 = vst [vmem:[%s977] ss:$9 sm:$0xff] %v583
      %1035 = vst [vmem:[%s979] ss:$9 sm:$0xff] %v584
      %1036 = vst [vmem:[%s981] ss:$9 sm:$0xff] %v650
      %v1037 = vld [vmem:[#allocation1] sm:$0xff]
      %1038 = vst [vmem:[#allocation1] ss:$9 sm:$0xff] %v651
      %1039 = vst [vmem:[%s969] ss:$9 sm:$0xff] %v652
      %1040 = vst [vmem:[%s971] ss:$9 sm:$0xff] %v653
      %1041 = vst [vmem:[%s973] ss:$9 sm:$0xff] %v654
      %1042 = vst [vmem:[%s975] ss:$9 sm:$0xff] %v655
      %1043 = vst [vmem:[%s977] ss:$9 sm:$0xff] %v656
      %1044 = vst [vmem:[%s979] ss:$9 sm:$0xff] %v585
      %1045 = vst [vmem:[%s981] ss:$9 sm:$0xff] %v586
      %v1046 = vld [vmem:[#allocation1] sm:$0xff]
      %1047 = vst [vmem:[#allocation1] ss:$9 sm:$0xff] %v657
      %1048 = vst [vmem:[%s969] ss:$9 sm:$0xff] %v658
      %1049 = vst [vmem:[%s971] ss:$9 sm:$0xff] %v659
      %1050 = vst [vmem:[%s973] ss:$9 sm:$0xff] %v660
      %1051 = vst [vmem:[%s975] ss:$9 sm:$0xff] %v661
      %1052 = vst [vmem:[%s977] ss:$9 sm:$0xff] %v662
      %1053 = vst [vmem:[%s979] ss:$9 sm:$0xff] %v663
      %1054 = vst [vmem:[%s981] ss:$9 sm:$0xff] %v587
      %v1055 = vld [vmem:[#allocation1] sm:$0xff]
      %1056 = vst [vmem:[#allocation1] ss:$9 sm:$0xff] %v588
      %1057 = vst [vmem:[%s969] ss:$9 sm:$0xff] %v664
      %1058 = vst [vmem:[%s971] ss:$9 sm:$0xff] %v665
      %1059 = vst [vmem:[%s973] ss:$9 sm:$0xff] %v666
      %1060 = vst [vmem:[%s975] ss:$9 sm:$0xff] %v667
      %1061 = vst [vmem:[%s977] ss:$9 sm:$0xff] %v668
      %1062 = vst [vmem:[%s979] ss:$9 sm:$0xff] %v669
      %1063 = vst [vmem:[%s981] ss:$9 sm:$0xff] %v670
      %v1064 = vld [vmem:[#allocation1] sm:$0xff]
      %1065 = vst [vmem:[#allocation1] ss:$9 sm:$0xff] %v589
      %v1066 = vld [vmem:[#allocation1] sm:$0xff]
      %1078 = vst [vmem:[#allocation1] ss:$9 sm:$0xff] %v671
      %s1079 = scalar_lea.vmem [#allocation1], 1
      %1080 = vst [vmem:[%s1079] ss:$9 sm:$0xff] %v707
      %s1081 = scalar_lea.vmem [#allocation1], 2
      %1082 = vst [vmem:[%s1081] ss:$9 sm:$0xff] %v708
      %s1083 = scalar_lea.vmem [#allocation1], 3
      %1084 = vst [vmem:[%s1083] ss:$9 sm:$0xff] %v709
      %s1085 = scalar_lea.vmem [#allocation1], 4
      %1086 = vst [vmem:[%s1085] ss:$9 sm:$0xff] %v710
      %s1087 = scalar_lea.vmem [#allocation1], 5
      %1088 = vst [vmem:[%s1087] ss:$9 sm:$0xff] %v711
      %s1089 = scalar_lea.vmem [#allocation1], 6
      %1090 = vst [vmem:[%s1089] ss:$9 sm:$0xff] %v712
      %s1091 = scalar_lea.vmem [#allocation1], 7
      %1092 = vst [vmem:[%s1091] ss:$9 sm:$0xff] %v713
      %v1093 = vld [vmem:[#allocation1] sm:$0xff]
      %1094 = vst [vmem:[#allocation1] ss:$9 sm:$0xff] %v672
      %1095 = vst [vmem:[%s1079] ss:$9 sm:$0xff] %v673
      %1096 = vst [vmem:[%s1081] ss:$9 sm:$0xff] %v714
      %1097 = vst [vmem:[%s1083] ss:$9 sm:$0xff] %v715
      %1098 = vst [vmem:[%s1085] ss:$9 sm:$0xff] %v716
      %1099 = vst [vmem:[%s1087] ss:$9 sm:$0xff] %v717
      %1100 = vst [vmem:[%s1089] ss:$9 sm:$0xff] %v718
      %1101 = vst [vmem:[%s1091] ss:$9 sm:$0xff] %v719
      %v1102 = vld [vmem:[#allocation1] sm:$0xff]
      %1103 = vst [vmem:[#allocation1] ss:$9 sm:$0xff] %v720
      %1104 = vst [vmem:[%s1079] ss:$9 sm:$0xff] %v674
      %1105 = vst [vmem:[%s1081] ss:$9 sm:$0xff] %v675
      %1106 = vst [vmem:[%s1083] ss:$9 sm:$0xff] %v721
      %1107 = vst [vmem:[%s1085] ss:$9 sm:$0xff] %v722
      %1108 = vst [vmem:[%s1087] ss:$9 sm:$0xff] %v723
      %1109 = vst [vmem:[%s1089] ss:$9 sm:$0xff] %v724
      %1110 = vst [vmem:[%s1091] ss:$9 sm:$0xff] %v725
      %v1111 = vld [vmem:[#allocation1] sm:$0xff]
      %1112 = vst [vmem:[#allocation1] ss:$9 sm:$0xff] %v726
      %1113 = vst [vmem:[%s1079] ss:$9 sm:$0xff] %v727
      %1114 = vst [vmem:[%s1081] ss:$9 sm:$0xff] %v676
      %1115 = vst [vmem:[%s1083] ss:$9 sm:$0xff] %v677
      %1116 = vst [vmem:[%s1085] ss:$9 sm:$0xff] %v728
      %1117 = vst [vmem:[%s1087] ss:$9 sm:$0xff] %v729
      %1118 = vst [vmem:[%s1089] ss:$9 sm:$0xff] %v730
      %1119 = vst [vmem:[%s1091] ss:$9 sm:$0xff] %v731
      %v1120 = vld [vmem:[#allocation1] sm:$0xff]
      %1121 = vst [vmem:[#allocation1] ss:$9 sm:$0xff] %v732
      %1122 = vst [vmem:[%s1079] ss:$9 sm:$0xff] %v733
      %1123 = vst [vmem:[%s1081] ss:$9 sm:$0xff] %v734
      %1124 = vst [vmem:[%s1083] ss:$9 sm:$0xff] %v678
      %1125 = vst [vmem:[%s1085] ss:$9 sm:$0xff] %v679
      %1126 = vst [vmem:[%s1087] ss:$9 sm:$0xff] %v735
      %1127 = vst [vmem:[%s1089] ss:$9 sm:$0xff] %v736
      %1128 = vst [vmem:[%s1091] ss:$9 sm:$0xff] %v737
      %v1129 = vld [vmem:[#allocation1] sm:$0xff]
      %1130 = vst [vmem:[#allocation1] ss:$9 sm:$0xff] %v738
      %1131 = vst [vmem:[%s1079] ss:$9 sm:$0xff] %v739
      %1132 = vst [vmem:[%s1081] ss:$9 sm:$0xff] %v740
      %1133 = vst [vmem:[%s1083] ss:$9 sm:$0xff] %v741
      %1134 = vst [vmem:[%s1085] ss:$9 sm:$0xff] %v680
      %1135 = vst [vmem:[%s1087] ss:$9 sm:$0xff] %v681
      %1136 = vst [vmem:[%s1089] ss:$9 sm:$0xff] %v742
      %1137 = vst [vmem:[%s1091] ss:$9 sm:$0xff] %v743
      %v1138 = vld [vmem:[#allocation1] sm:$0xff]
      %1139 = vst [vmem:[#allocation1] ss:$9 sm:$0xff] %v744
      %1140 = vst [vmem:[%s1079] ss:$9 sm:$0xff] %v745
      %1141 = vst [vmem:[%s1081] ss:$9 sm:$0xff] %v746
      %1142 = vst [vmem:[%s1083] ss:$9 sm:$0xff] %v747
      %1143 = vst [vmem:[%s1085] ss:$9 sm:$0xff] %v748
      %1144 = vst [vmem:[%s1087] ss:$9 sm:$0xff] %v682
      %1145 = vst [vmem:[%s1089] ss:$9 sm:$0xff] %v683
      %1146 = vst [vmem:[%s1091] ss:$9 sm:$0xff] %v749
      %v1147 = vld [vmem:[#allocation1] sm:$0xff]
      %1148 = vst [vmem:[#allocation1] ss:$9 sm:$0xff] %v750
      %1149 = vst [vmem:[%s1079] ss:$9 sm:$0xff] %v751
      %1150 = vst [vmem:[%s1081] ss:$9 sm:$0xff] %v752
      %1151 = vst [vmem:[%s1083] ss:$9 sm:$0xff] %v753
      %1152 = vst [vmem:[%s1085] ss:$9 sm:$0xff] %v754
      %1153 = vst [vmem:[%s1087] ss:$9 sm:$0xff] %v755
      %1154 = vst [vmem:[%s1089] ss:$9 sm:$0xff] %v684
      %1155 = vst [vmem:[%s1091] ss:$9 sm:$0xff] %v685
      %v1156 = vld [vmem:[#allocation1] sm:$0xff]
      %1157 = vst [vmem:[#allocation1] ss:$9 sm:$0xff] %v756
      %1158 = vst [vmem:[%s1079] ss:$9 sm:$0xff] %v757
      %1159 = vst [vmem:[%s1081] ss:$9 sm:$0xff] %v758
      %1160 = vst [vmem:[%s1083] ss:$9 sm:$0xff] %v759
      %1161 = vst [vmem:[%s1085] ss:$9 sm:$0xff] %v760
      %1162 = vst [vmem:[%s1087] ss:$9 sm:$0xff] %v761
      %1163 = vst [vmem:[%s1089] ss:$9 sm:$0xff] %v762
      %1164 = vst [vmem:[%s1091] ss:$9 sm:$0xff] %v686
      %v1165 = vld [vmem:[#allocation1] sm:$0xff]
      %1166 = vst [vmem:[#allocation1] ss:$9 sm:$0xff] %v687
      %1167 = vst [vmem:[%s1079] ss:$9 sm:$0xff] %v763
      %1168 = vst [vmem:[%s1081] ss:$9 sm:$0xff] %v764
      %1169 = vst [vmem:[%s1083] ss:$9 sm:$0xff] %v765
      %1170 = vst [vmem:[%s1085] ss:$9 sm:$0xff] %v766
      %1171 = vst [vmem:[%s1087] ss:$9 sm:$0xff] %v767
      %1172 = vst [vmem:[%s1089] ss:$9 sm:$0xff] %v768
      %1173 = vst [vmem:[%s1091] ss:$9 sm:$0xff] %v769
      %v1174 = vld [vmem:[#allocation1] sm:$0xff]
      %1175 = vst [vmem:[#allocation1] ss:$9 sm:$0xff] %v688
      %v1176 = vld [vmem:[#allocation1] sm:$0xff]
      %1177 = vrot.lane.b32.xlu0 %v1093, 8
      %v1178 = vpop.permute.xlu0 %1177
      %1179 = vrot.lane.b32.xlu0 %v1102, 8
      %v1180 = vpop.permute.xlu0 %1179
      %1181 = vrot.lane.b32.xlu0 %v1111, 8
      %v1182 = vpop.permute.xlu0 %1181
      %1183 = vrot.lane.b32.xlu0 %v1120, 8
      %v1184 = vpop.permute.xlu0 %1183
      %1185 = vrot.lane.b32.xlu0 %v1129, 8
      %v1186 = vpop.permute.xlu0 %1185
      %1187 = vrot.lane.b32.xlu0 %v1138, 8
      %v1188 = vpop.permute.xlu0 %1187
      %1189 = vrot.lane.b32.xlu0 %v1147, 8
      %v1190 = vpop.permute.xlu0 %1189
      %1191 = vrot.lane.b32.xlu0 %v1156, 8
      %v1192 = vpop.permute.xlu0 %1191
      %1193 = vrot.lane.b32.xlu0 %v1165, 8
      %v1194 = vpop.permute.xlu0 %1193
      %1195 = vrot.lane.b32.xlu0 %v1174, 8
      %v1196 = vpop.permute.xlu0 %1195
      %1197 = vrot.lane.b32.xlu0 %v1176, 8
      %v1198 = vpop.permute.xlu0 %1197
      %1210 = vst [vmem:[#allocation1] ss:$9 sm:$0xff] %v770
      %s1211 = scalar_lea.vmem [#allocation1], 1
      %1212 = vst [vmem:[%s1211] ss:$9 sm:$0xff] %v806
      %s1213 = scalar_lea.vmem [#allocation1], 2
      %1214 = vst [vmem:[%s1213] ss:$9 sm:$0xff] %v807
      %s1215 = scalar_lea.vmem [#allocation1], 3
      %1216 = vst [vmem:[%s1215] ss:$9 sm:$0xff] %v808
      %s1217 = scalar_lea.vmem [#allocation1], 4
      %1218 = vst [vmem:[%s1217] ss:$9 sm:$0xff] %v809
      %s1219 = scalar_lea.vmem [#allocation1], 5
      %1220 = vst [vmem:[%s1219] ss:$9 sm:$0xff] %v810
      %s1221 = scalar_lea.vmem [#allocation1], 6
      %1222 = vst [vmem:[%s1221] ss:$9 sm:$0xff] %v811
      %s1223 = scalar_lea.vmem [#allocation1], 7
      %1224 = vst [vmem:[%s1223] ss:$9 sm:$0xff] %v812
      %v1225 = vld [vmem:[#allocation1] sm:$0xff]
      %1226 = vst [vmem:[#allocation1] ss:$9 sm:$0xff] %v771
      %1227 = vst [vmem:[%s1211] ss:$9 sm:$0xff] %v772
      %1228 = vst [vmem:[%s1213] ss:$9 sm:$0xff] %v813
      %1229 = vst [vmem:[%s1215] ss:$9 sm:$0xff] %v814
      %1230 = vst [vmem:[%s1217] ss:$9 sm:$0xff] %v815
      %1231 = vst [vmem:[%s1219] ss:$9 sm:$0xff] %v816
      %1232 = vst [vmem:[%s1221] ss:$9 sm:$0xff] %v817
      %1233 = vst [vmem:[%s1223] ss:$9 sm:$0xff] %v818
      %v1234 = vld [vmem:[#allocation1] sm:$0xff]
      %1235 = vst [vmem:[#allocation1] ss:$9 sm:$0xff] %v819
      %1236 = vst [vmem:[%s1211] ss:$9 sm:$0xff] %v773
      %1237 = vst [vmem:[%s1213] ss:$9 sm:$0xff] %v774
      %1238 = vst [vmem:[%s1215] ss:$9 sm:$0xff] %v820
      %1239 = vst [vmem:[%s1217] ss:$9 sm:$0xff] %v821
      %1240 = vst [vmem:[%s1219] ss:$9 sm:$0xff] %v822
      %1241 = vst [vmem:[%s1221] ss:$9 sm:$0xff] %v823
      %1242 = vst [vmem:[%s1223] ss:$9 sm:$0xff] %v824
      %v1243 = vld [vmem:[#allocation1] sm:$0xff]
      %1244 = vst [vmem:[#allocation1] ss:$9 sm:$0xff] %v825
      %1245 = vst [vmem:[%s1211] ss:$9 sm:$0xff] %v826
      %1246 = vst [vmem:[%s1213] ss:$9 sm:$0xff] %v775
      %1247 = vst [vmem:[%s1215] ss:$9 sm:$0xff] %v776
      %1248 = vst [vmem:[%s1217] ss:$9 sm:$0xff] %v827
      %1249 = vst [vmem:[%s1219] ss:$9 sm:$0xff] %v828
      %1250 = vst [vmem:[%s1221] ss:$9 sm:$0xff] %v829
      %1251 = vst [vmem:[%s1223] ss:$9 sm:$0xff] %v830
      %v1252 = vld [vmem:[#allocation1] sm:$0xff]
      %1253 = vst [vmem:[#allocation1] ss:$9 sm:$0xff] %v831
      %1254 = vst [vmem:[%s1211] ss:$9 sm:$0xff] %v832
      %1255 = vst [vmem:[%s1213] ss:$9 sm:$0xff] %v833
      %1256 = vst [vmem:[%s1215] ss:$9 sm:$0xff] %v777
      %1257 = vst [vmem:[%s1217] ss:$9 sm:$0xff] %v778
      %1258 = vst [vmem:[%s1219] ss:$9 sm:$0xff] %v834
      %1259 = vst [vmem:[%s1221] ss:$9 sm:$0xff] %v835
      %1260 = vst [vmem:[%s1223] ss:$9 sm:$0xff] %v836
      %v1261 = vld [vmem:[#allocation1] sm:$0xff]
      %1262 = vst [vmem:[#allocation1] ss:$9 sm:$0xff] %v837
      %1263 = vst [vmem:[%s1211] ss:$9 sm:$0xff] %v838
      %1264 = vst [vmem:[%s1213] ss:$9 sm:$0xff] %v839
      %1265 = vst [vmem:[%s1215] ss:$9 sm:$0xff] %v840
      %1266 = vst [vmem:[%s1217] ss:$9 sm:$0xff] %v779
      %1267 = vst [vmem:[%s1219] ss:$9 sm:$0xff] %v780
      %1268 = vst [vmem:[%s1221] ss:$9 sm:$0xff] %v841
      %1269 = vst [vmem:[%s1223] ss:$9 sm:$0xff] %v842
      %v1270 = vld [vmem:[#allocation1] sm:$0xff]
      %1271 = vst [vmem:[#allocation1] ss:$9 sm:$0xff] %v843
      %1272 = vst [vmem:[%s1211] ss:$9 sm:$0xff] %v844
      %1273 = vst [vmem:[%s1213] ss:$9 sm:$0xff] %v845
      %1274 = vst [vmem:[%s1215] ss:$9 sm:$0xff] %v846
      %1275 = vst [vmem:[%s1217] ss:$9 sm:$0xff] %v847
      %1276 = vst [vmem:[%s1219] ss:$9 sm:$0xff] %v781
      %1277 = vst [vmem:[%s1221] ss:$9 sm:$0xff] %v782
      %1278 = vst [vmem:[%s1223] ss:$9 sm:$0xff] %v848
      %v1279 = vld [vmem:[#allocation1] sm:$0xff]
      %1280 = vst [vmem:[#allocation1] ss:$9 sm:$0xff] %v849
      %1281 = vst [vmem:[%s1211] ss:$9 sm:$0xff] %v850
      %1282 = vst [vmem:[%s1213] ss:$9 sm:$0xff] %v851
      %1283 = vst [vmem:[%s1215] ss:$9 sm:$0xff] %v852
      %1284 = vst [vmem:[%s1217] ss:$9 sm:$0xff] %v853
      %1285 = vst [vmem:[%s1219] ss:$9 sm:$0xff] %v854
      %1286 = vst [vmem:[%s1221] ss:$9 sm:$0xff] %v783
      %1287 = vst [vmem:[%s1223] ss:$9 sm:$0xff] %v784
      %v1288 = vld [vmem:[#allocation1] sm:$0xff]
      %1289 = vst [vmem:[#allocation1] ss:$9 sm:$0xff] %v855
      %1290 = vst [vmem:[%s1211] ss:$9 sm:$0xff] %v856
      %1291 = vst [vmem:[%s1213] ss:$9 sm:$0xff] %v857
      %1292 = vst [vmem:[%s1215] ss:$9 sm:$0xff] %v858
      %1293 = vst [vmem:[%s1217] ss:$9 sm:$0xff] %v859
      %1294 = vst [vmem:[%s1219] ss:$9 sm:$0xff] %v860
      %1295 = vst [vmem:[%s1221] ss:$9 sm:$0xff] %v861
      %1296 = vst [vmem:[%s1223] ss:$9 sm:$0xff] %v785
      %v1297 = vld [vmem:[#allocation1] sm:$0xff]
      %1298 = vst [vmem:[#allocation1] ss:$9 sm:$0xff] %v786
      %1299 = vst [vmem:[%s1211] ss:$9 sm:$0xff] %v862
      %1300 = vst [vmem:[%s1213] ss:$9 sm:$0xff] %v863
      %1301 = vst [vmem:[%s1215] ss:$9 sm:$0xff] %v864
      %1302 = vst [vmem:[%s1217] ss:$9 sm:$0xff] %v865
      %1303 = vst [vmem:[%s1219] ss:$9 sm:$0xff] %v866
      %1304 = vst [vmem:[%s1221] ss:$9 sm:$0xff] %v867
      %1305 = vst [vmem:[%s1223] ss:$9 sm:$0xff] %v868
      %v1306 = vld [vmem:[#allocation1] sm:$0xff]
      %1307 = vst [vmem:[#allocation1] ss:$9 sm:$0xff] %v787
      %v1308 = vld [vmem:[#allocation1] sm:$0xff]
      %1309 = vrot.lane.b32.xlu0 %v1225, 16
      %v1310 = vpop.permute.xlu0 %1309
      %1311 = vrot.lane.b32.xlu0 %v1234, 16
      %v1312 = vpop.permute.xlu0 %1311
      %1313 = vrot.lane.b32.xlu0 %v1243, 16
      %v1314 = vpop.permute.xlu0 %1313
      %1315 = vrot.lane.b32.xlu0 %v1252, 16
      %v1316 = vpop.permute.xlu0 %1315
      %1317 = vrot.lane.b32.xlu0 %v1261, 16
      %v1318 = vpop.permute.xlu0 %1317
      %1319 = vrot.lane.b32.xlu0 %v1270, 16
      %v1320 = vpop.permute.xlu0 %1319
      %1321 = vrot.lane.b32.xlu0 %v1279, 16
      %v1322 = vpop.permute.xlu0 %1321
      %1323 = vrot.lane.b32.xlu0 %v1288, 16
      %v1324 = vpop.permute.xlu0 %1323
      %1325 = vrot.lane.b32.xlu0 %v1297, 16
      %v1326 = vpop.permute.xlu0 %1325
      %1327 = vrot.lane.b32.xlu0 %v1306, 16
      %v1328 = vpop.permute.xlu0 %1327
      %1329 = vrot.lane.b32.xlu0 %v1308, 16
      %v1330 = vpop.permute.xlu0 %1329
      %1342 = vst [vmem:[#allocation1] ss:$9 sm:$0xff] %v869
      %s1343 = scalar_lea.vmem [#allocation1], 1
      %1344 = vst [vmem:[%s1343] ss:$9 sm:$0xff] %v905
      %s1345 = scalar_lea.vmem [#allocation1], 2
      %1346 = vst [vmem:[%s1345] ss:$9 sm:$0xff] %v906
      %s1347 = scalar_lea.vmem [#allocation1], 3
      %1348 = vst [vmem:[%s1347] ss:$9 sm:$0xff] %v907
      %s1349 = scalar_lea.vmem [#allocation1], 4
      %1350 = vst [vmem:[%s1349] ss:$9 sm:$0xff] %v908
      %s1351 = scalar_lea.vmem [#allocation1], 5
      %1352 = vst [vmem:[%s1351] ss:$9 sm:$0xff] %v909
      %s1353 = scalar_lea.vmem [#allocation1], 6
      %1354 = vst [vmem:[%s1353] ss:$9 sm:$0xff] %v910
      %s1355 = scalar_lea.vmem [#allocation1], 7
      %1356 = vst [vmem:[%s1355] ss:$9 sm:$0xff] %v911
      %v1357 = vld [vmem:[#allocation1] sm:$0xff]
      %1358 = vst [vmem:[#allocation1] ss:$9 sm:$0xff] %v870
      %1359 = vst [vmem:[%s1343] ss:$9 sm:$0xff] %v871
      %1360 = vst [vmem:[%s1345] ss:$9 sm:$0xff] %v912
      %1361 = vst [vmem:[%s1347] ss:$9 sm:$0xff] %v913
      %1362 = vst [vmem:[%s1349] ss:$9 sm:$0xff] %v914
      %1363 = vst [vmem:[%s1351] ss:$9 sm:$0xff] %v915
      %1364 = vst [vmem:[%s1353] ss:$9 sm:$0xff] %v916
      %1365 = vst [vmem:[%s1355] ss:$9 sm:$0xff] %v917
      %v1366 = vld [vmem:[#allocation1] sm:$0xff]
      %1367 = vst [vmem:[#allocation1] ss:$9 sm:$0xff] %v918
      %1368 = vst [vmem:[%s1343] ss:$9 sm:$0xff] %v872
      %1369 = vst [vmem:[%s1345] ss:$9 sm:$0xff] %v873
      %1370 = vst [vmem:[%s1347] ss:$9 sm:$0xff] %v919
      %1371 = vst [vmem:[%s1349] ss:$9 sm:$0xff] %v920
      %1372 = vst [vmem:[%s1351] ss:$9 sm:$0xff] %v921
      %1373 = vst [vmem:[%s1353] ss:$9 sm:$0xff] %v922
      %1374 = vst [vmem:[%s1355] ss:$9 sm:$0xff] %v923
      %v1375 = vld [vmem:[#allocation1] sm:$0xff]
      %1376 = vst [vmem:[#allocation1] ss:$9 sm:$0xff] %v924
      %1377 = vst [vmem:[%s1343] ss:$9 sm:$0xff] %v925
      %1378 = vst [vmem:[%s1345] ss:$9 sm:$0xff] %v874
      %1379 = vst [vmem:[%s1347] ss:$9 sm:$0xff] %v875
      %1380 = vst [vmem:[%s1349] ss:$9 sm:$0xff] %v926
      %1381 = vst [vmem:[%s1351] ss:$9 sm:$0xff] %v927
      %1382 = vst [vmem:[%s1353] ss:$9 sm:$0xff] %v928
      %1383 = vst [vmem:[%s1355] ss:$9 sm:$0xff] %v929
      %v1384 = vld [vmem:[#allocation1] sm:$0xff]
      %1385 = vst [vmem:[#allocation1] ss:$9 sm:$0xff] %v930
      %1386 = vst [vmem:[%s1343] ss:$9 sm:$0xff] %v931
      %1387 = vst [vmem:[%s1345] ss:$9 sm:$0xff] %v932
      %1388 = vst [vmem:[%s1347] ss:$9 sm:$0xff] %v876
      %1389 = vst [vmem:[%s1349] ss:$9 sm:$0xff] %v877
      %1390 = vst [vmem:[%s1351] ss:$9 sm:$0xff] %v933
      %1391 = vst [vmem:[%s1353] ss:$9 sm:$0xff] %v934
      %1392 = vst [vmem:[%s1355] ss:$9 sm:$0xff] %v935
      %v1393 = vld [vmem:[#allocation1] sm:$0xff]
      %1394 = vst [vmem:[#allocation1] ss:$9 sm:$0xff] %v936
      %1395 = vst [vmem:[%s1343] ss:$9 sm:$0xff] %v937
      %1396 = vst [vmem:[%s1345] ss:$9 sm:$0xff] %v938
      %1397 = vst [vmem:[%s1347] ss:$9 sm:$0xff] %v939
      %1398 = vst [vmem:[%s1349] ss:$9 sm:$0xff] %v878
      %1399 = vst [vmem:[%s1351] ss:$9 sm:$0xff] %v879
      %1400 = vst [vmem:[%s1353] ss:$9 sm:$0xff] %v940
      %1401 = vst [vmem:[%s1355] ss:$9 sm:$0xff] %v941
      %v1402 = vld [vmem:[#allocation1] sm:$0xff]
      %1403 = vst [vmem:[#allocation1] ss:$9 sm:$0xff] %v942
      %1404 = vst [vmem:[%s1343] ss:$9 sm:$0xff] %v943
      %1405 = vst [vmem:[%s1345] ss:$9 sm:$0xff] %v944
      %1406 = vst [vmem:[%s1347] ss:$9 sm:$0xff] %v945
      %1407 = vst [vmem:[%s1349] ss:$9 sm:$0xff] %v946
      %1408 = vst [vmem:[%s1351] ss:$9 sm:$0xff] %v880
      %1409 = vst [vmem:[%s1353] ss:$9 sm:$0xff] %v881
      %1410 = vst [vmem:[%s1355] ss:$9 sm:$0xff] %v947
      %v1411 = vld [vmem:[#allocation1] sm:$0xff]
      %1412 = vst [vmem:[#allocation1] ss:$9 sm:$0xff] %v948
      %1413 = vst [vmem:[%s1343] ss:$9 sm:$0xff] %v949
      %1414 = vst [vmem:[%s1345] ss:$9 sm:$0xff] %v950
      %1415 = vst [vmem:[%s1347] ss:$9 sm:$0xff] %v951
      %1416 = vst [vmem:[%s1349] ss:$9 sm:$0xff] %v952
      %1417 = vst [vmem:[%s1351] ss:$9 sm:$0xff] %v953
      %1418 = vst [vmem:[%s1353] ss:$9 sm:$0xff] %v882
      %1419 = vst [vmem:[%s1355] ss:$9 sm:$0xff] %v883
      %v1420 = vld [vmem:[#allocation1] sm:$0xff]
      %1421 = vst [vmem:[#allocation1] ss:$9 sm:$0xff] %v954
      %1422 = vst [vmem:[%s1343] ss:$9 sm:$0xff] %v955
      %1423 = vst [vmem:[%s1345] ss:$9 sm:$0xff] %v956
      %1424 = vst [vmem:[%s1347] ss:$9 sm:$0xff] %v957
      %1425 = vst [vmem:[%s1349] ss:$9 sm:$0xff] %v958
      %1426 = vst [vmem:[%s1351] ss:$9 sm:$0xff] %v959
      %1427 = vst [vmem:[%s1353] ss:$9 sm:$0xff] %v960
      %1428 = vst [vmem:[%s1355] ss:$9 sm:$0xff] %v884
      %v1429 = vld [vmem:[#allocation1] sm:$0xff]
      %1430 = vst [vmem:[#allocation1] ss:$9 sm:$0xff] %v885
      %1431 = vst [vmem:[%s1343] ss:$9 sm:$0xff] %v961
      %1432 = vst [vmem:[%s1345] ss:$9 sm:$0xff] %v962
      %1433 = vst [vmem:[%s1347] ss:$9 sm:$0xff] %v963
      %1434 = vst [vmem:[%s1349] ss:$9 sm:$0xff] %v964
      %1435 = vst [vmem:[%s1351] ss:$9 sm:$0xff] %v965
      %1436 = vst [vmem:[%s1353] ss:$9 sm:$0xff] %v966
      %1437 = vst [vmem:[%s1355] ss:$9 sm:$0xff] %v967
      %v1438 = vld [vmem:[#allocation1] sm:$0xff]
      %1439 = vst [vmem:[#allocation1] ss:$9 sm:$0xff] %v886
      %v1440 = vld [vmem:[#allocation1] sm:$0xff]
      %1441 = vrot.lane.b32.xlu0 %v1357, 24
      %v1442 = vpop.permute.xlu0 %1441
      %1443 = vrot.lane.b32.xlu0 %v1366, 24
      %v1444 = vpop.permute.xlu0 %1443
      %1445 = vrot.lane.b32.xlu0 %v1375, 24
      %v1446 = vpop.permute.xlu0 %1445
      %1447 = vrot.lane.b32.xlu0 %v1384, 24
      %v1448 = vpop.permute.xlu0 %1447
      %1449 = vrot.lane.b32.xlu0 %v1393, 24
      %v1450 = vpop.permute.xlu0 %1449
      %1451 = vrot.lane.b32.xlu0 %v1402, 24
      %v1452 = vpop.permute.xlu0 %1451
      %1453 = vrot.lane.b32.xlu0 %v1411, 24
      %v1454 = vpop.permute.xlu0 %1453
      %1455 = vrot.lane.b32.xlu0 %v1420, 24
      %v1456 = vpop.permute.xlu0 %1455
      %1457 = vrot.lane.b32.xlu0 %v1429, 24
      %v1458 = vpop.permute.xlu0 %1457
      %1459 = vrot.lane.b32.xlu0 %v1438, 24
      %v1460 = vpop.permute.xlu0 %1459
      %1461 = vrot.lane.b32.xlu0 %v1440, 24
      %v1462 = vpop.permute.xlu0 %1461
      %v1474 = vsel %vm541, %v983, %v1178
      %v1475 = vsel %vm541, %v992, %v1180
      %v1476 = vsel %vm541, %v1001, %v1182
      %v1477 = vsel %vm541, %v1010, %v1184
      %v1478 = vsel %vm541, %v1019, %v1186
      %v1479 = vsel %vm541, %v1028, %v1188
      %v1480 = vsel %vm541, %v1037, %v1190
      %v1481 = vsel %vm541, %v1046, %v1192
      %v1482 = vsel %vm541, %v1055, %v1194
      %v1483 = vsel %vm541, %v1064, %v1196
      %v1484 = vsel %vm541, %v1066, %v1198
      %v1485 = vsel %vm432, %v1474, %v1310
      %v1486 = vsel %vm432, %v1475, %v1312
      %v1487 = vsel %vm432, %v1476, %v1314
      %v1488 = vsel %vm432, %v1477, %v1316
      %v1489 = vsel %vm432, %v1478, %v1318
      %v1490 = vsel %vm432, %v1479, %v1320
      %v1491 = vsel %vm432, %v1480, %v1322
      %v1492 = vsel %vm432, %v1481, %v1324
      %v1493 = vsel %vm432, %v1482, %v1326
      %v1494 = vsel %vm432, %v1483, %v1328
      %v1495 = vsel %vm432, %v1484, %v1330
      %vm1496 = vcmask 195584
      %v1497 = vsel %vm1496, %v1485, %v1442
      %v1498 = vsel %vm1496, %v1486, %v1444
      %v1499 = vsel %vm1496, %v1487, %v1446
      %v1500 = vsel %vm1496, %v1488, %v1448
      %v1501 = vsel %vm1496, %v1489, %v1450
      %v1502 = vsel %vm1496, %v1490, %v1452
      %v1503 = vsel %vm1496, %v1491, %v1454
      %v1504 = vsel %vm1496, %v1492, %v1456
      %v1505 = vsel %vm1496, %v1493, %v1458
      %v1506 = vsel %vm1496, %v1494, %v1460
      %v1507 = vsel %vm1496, %v1495, %v1462
      %v1508 = vld [vmem:[%s2] sm:$0xff]
      %v1509 = vld [vmem:[%s2 + $0x8] sm:$0xff]
      %v1510 = vld [vmem:[%s2 + $0x10] sm:$0xff]
      %v1511 = vld [vmem:[%s2 + $0x18] sm:$0xff]
      %v1513 = vsel %vm441, %v1497, 0
      %v1516 = vsel %vm441, %v1498, 0
      %v1519 = vsel %vm441, %v1499, 0
      %v1522 = vsel %vm441, %v1500, 0
      %v1525 = vsel %vm441, %v1501, 0
      %v1528 = vsel %vm441, %v1502, 0
      %v1531 = vsel %vm441, %v1503, 0
      %v1534 = vsel %vm441, %v1504, 0
      %v1537 = vsel %vm441, %v1505, 0
      %v1540 = vsel %vm441, %v1506, 0
      %v1543 = vsel %vm441, %v1507, 0
      %1545 = vmatpush.msra.mxu0 0.0
      %1546 = vmatpush.msra.mxu0 0.0
      %1547 = vmatpush.msra.mxu0 0.0
      %1548 = vmatpush.msra.mxu0 0.0
      %1549 = vmatpush.msra.mxu0 0.0
      %1550 = vmatpush.msra.mxu0 0.0
      %1551 = vmatpush.msra.mxu0 0.0
      %1552 = vmatpush.msra.mxu0 0.0
      %1553 = vmatpush.msra.mxu0 0.0
      %1554 = vmatpush.msra.mxu0 0.0
      %1555 = vmatpush.msra.mxu0 0.0
      %1556 = vmatpush.msra.mxu0 0.0
      %1557 = vmatpush.msra.mxu0 %v1511
      %1558 = vmatpush.msra.mxu0 %v1510
      %1559 = vmatpush.msra.mxu0 %v1509
      %1560 = vmatpush.msra.mxu0 %v1508
      %1561 = vmatmul.f32.gmra.mxu0 %v1513
      %v1562 = vpop.f32.mrf.mxu0
      %v1563 = vadd.f32 0.0, %v1562
      %1564 = vmatmul.f32.gmra.mxu0 %v1516
      %v1565 = vpop.f32.mrf.mxu0
      %v1566 = vadd.f32 0.0, %v1565
      %1567 = vmatmul.f32.gmra.mxu0 %v1519
      %v1568 = vpop.f32.mrf.mxu0
      %v1569 = vadd.f32 0.0, %v1568
      %1570 = vmatmul.f32.gmra.mxu0 %v1522
      %v1571 = vpop.f32.mrf.mxu0
      %v1572 = vadd.f32 0.0, %v1571
      %1573 = vmatmul.f32.gmra.mxu0 %v1525
      %v1574 = vpop.f32.mrf.mxu0
      %v1575 = vadd.f32 0.0, %v1574
      %1576 = vmatmul.f32.gmra.mxu0 %v1528
      %v1577 = vpop.f32.mrf.mxu0
      %v1578 = vadd.f32 0.0, %v1577
      %1579 = vmatmul.f32.gmra.mxu0 %v1531
      %v1580 = vpop.f32.mrf.mxu0
      %v1581 = vadd.f32 0.0, %v1580
      %1582 = vmatmul.f32.gmra.mxu0 %v1534
      %v1583 = vpop.f32.mrf.mxu0
      %v1584 = vadd.f32 0.0, %v1583
      %1585 = vmatmul.f32.gmra.mxu0 %v1537
      %v1586 = vpop.f32.mrf.mxu0
      %v1587 = vadd.f32 0.0, %v1586
      %1588 = vmatmul.f32.gmra.mxu0 %v1540
      %v1589 = vpop.f32.mrf.mxu0
      %v1590 = vadd.f32 0.0, %v1589
      %1591 = vmatmul.f32.gmra.mxu0 %v1543
      %v1592 = vpop.f32.mrf.mxu0
      %v1593 = vadd.f32 0.0, %v1592
      %1594 = vdwg.mxu0
      %v1606 = vrot.slane %v1563, 1
      %v1607 = vrot.slane %v1563, 2
      %v1608 = vrot.slane %v1563, 3
      %v1609 = vrot.slane %v1563, 4
      %v1610 = vrot.slane %v1563, 5
      %v1611 = vrot.slane %v1563, 6
      %v1612 = vrot.slane %v1563, 7
      %v1613 = vrot.slane %v1566, 1
      %v1614 = vrot.slane %v1566, 2
      %v1615 = vrot.slane %v1566, 3
      %v1616 = vrot.slane %v1566, 4
      %v1617 = vrot.slane %v1566, 5
      %v1618 = vrot.slane %v1566, 6
      %v1619 = vrot.slane %v1566, 7
      %v1620 = vrot.slane %v1569, 1
      %v1621 = vrot.slane %v1569, 2
      %v1622 = vrot.slane %v1569, 3
      %v1623 = vrot.slane %v1569, 4
      %v1624 = vrot.slane %v1569, 5
      %v1625 = vrot.slane %v1569, 6
      %v1626 = vrot.slane %v1569, 7
      %v1627 = vrot.slane %v1572, 1
      %v1628 = vrot.slane %v1572, 2
      %v1629 = vrot.slane %v1572, 3
      %v1630 = vrot.slane %v1572, 4
      %v1631 = vrot.slane %v1572, 5
      %v1632 = vrot.slane %v1572, 6
      %v1633 = vrot.slane %v1572, 7
      %v1634 = vrot.slane %v1575, 1
      %v1635 = vrot.slane %v1575, 2
      %v1636 = vrot.slane %v1575, 3
      %v1637 = vrot.slane %v1575, 4
      %v1638 = vrot.slane %v1575, 5
      %v1639 = vrot.slane %v1575, 6
      %v1640 = vrot.slane %v1575, 7
      %v1641 = vrot.slane %v1578, 1
      %v1642 = vrot.slane %v1578, 2
      %v1643 = vrot.slane %v1578, 3
      %v1644 = vrot.slane %v1578, 4
      %v1645 = vrot.slane %v1578, 5
      %v1646 = vrot.slane %v1578, 6
      %v1647 = vrot.slane %v1578, 7
      %v1648 = vrot.slane %v1581, 1
      %v1649 = vrot.slane %v1581, 2
      %v1650 = vrot.slane %v1581, 3
      %v1651 = vrot.slane %v1581, 4
      %v1652 = vrot.slane %v1581, 5
      %v1653 = vrot.slane %v1581, 6
      %v1654 = vrot.slane %v1581, 7
      %v1655 = vrot.slane %v1584, 1
      %v1656 = vrot.slane %v1584, 2
      %v1657 = vrot.slane %v1584, 3
      %v1658 = vrot.slane %v1584, 4
      %v1659 = vrot.slane %v1584, 5
      %v1660 = vrot.slane %v1584, 6
      %v1661 = vrot.slane %v1584, 7
      %v1662 = vrot.slane %v1587, 1
      %v1663 = vrot.slane %v1587, 2
      %v1664 = vrot.slane %v1587, 3
      %v1665 = vrot.slane %v1587, 4
      %v1666 = vrot.slane %v1587, 5
      %v1667 = vrot.slane %v1587, 6
      %v1668 = vrot.slane %v1587, 7
      %v1669 = vrot.slane %v1590, 1
      %v1670 = vrot.slane %v1590, 2
      %v1671 = vrot.slane %v1590, 3
      %v1672 = vrot.slane %v1590, 4
      %v1673 = vrot.slane %v1590, 5
      %v1674 = vrot.slane %v1590, 6
      %v1675 = vrot.slane %v1590, 7
      %1676 = vst [vmem:[#allocation1] ss:$9 sm:$0xff] %v1563
      %s1677 = scalar_lea.vmem [#allocation1], 1
      %1678 = vst [vmem:[%s1677] ss:$9 sm:$0xff] %v1606
      %s1679 = scalar_lea.vmem [#allocation1], 2
      %1680 = vst [vmem:[%s1679] ss:$9 sm:$0xff] %v1607
      %s1681 = scalar_lea.vmem [#allocation1], 3
      %1682 = vst [vmem:[%s1681] ss:$9 sm:$0xff] %v1608
      %s1683 = scalar_lea.vmem [#allocation1], 4
      %1684 = vst [vmem:[%s1683] ss:$9 sm:$0xff] %v1609
      %s1685 = scalar_lea.vmem [#allocation1], 5
      %1686 = vst [vmem:[%s1685] ss:$9 sm:$0xff] %v1610
      %s1687 = scalar_lea.vmem [#allocation1], 6
      %1688 = vst [vmem:[%s1687] ss:$9 sm:$0xff] %v1611
      %s1689 = scalar_lea.vmem [#allocation1], 7
      %1690 = vst [vmem:[%s1689] ss:$9 sm:$0xff] %v1612
      %v1691 = vld [vmem:[#allocation1] sm:$0xff]
      %1692 = vst [vmem:[#allocation1] ss:$9 sm:$0xff] %v1613
      %1693 = vst [vmem:[%s1677] ss:$9 sm:$0xff] %v1614
      %1694 = vst [vmem:[%s1679] ss:$9 sm:$0xff] %v1615
      %1695 = vst [vmem:[%s1681] ss:$9 sm:$0xff] %v1616
      %1696 = vst [vmem:[%s1683] ss:$9 sm:$0xff] %v1617
      %1697 = vst [vmem:[%s1685] ss:$9 sm:$0xff] %v1618
      %1698 = vst [vmem:[%s1687] ss:$9 sm:$0xff] %v1619
      %1699 = vst [vmem:[%s1689] ss:$9 sm:$0xff] %v1569
      %v1700 = vld [vmem:[#allocation1] sm:$0xff]
      %1701 = vst [vmem:[#allocation1] ss:$9 sm:$0xff] %v1621
      %1702 = vst [vmem:[%s1677] ss:$9 sm:$0xff] %v1622
      %1703 = vst [vmem:[%s1679] ss:$9 sm:$0xff] %v1623
      %1704 = vst [vmem:[%s1681] ss:$9 sm:$0xff] %v1624
      %1705 = vst [vmem:[%s1683] ss:$9 sm:$0xff] %v1625
      %1706 = vst [vmem:[%s1685] ss:$9 sm:$0xff] %v1626
      %1707 = vst [vmem:[%s1687] ss:$9 sm:$0xff] %v1572
      %1708 = vst [vmem:[%s1689] ss:$9 sm:$0xff] %v1627
      %v1709 = vld [vmem:[#allocation1] sm:$0xff]
      %1710 = vst [vmem:[#allocation1] ss:$9 sm:$0xff] %v1629
      %1711 = vst [vmem:[%s1677] ss:$9 sm:$0xff] %v1630
      %1712 = vst [vmem:[%s1679] ss:$9 sm:$0xff] %v1631
      %1713 = vst [vmem:[%s1681] ss:$9 sm:$0xff] %v1632
      %1714 = vst [vmem:[%s1683] ss:$9 sm:$0xff] %v1633
      %1715 = vst [vmem:[%s1685] ss:$9 sm:$0xff] %v1575
      %1716 = vst [vmem:[%s1687] ss:$9 sm:$0xff] %v1634
      %1717 = vst [vmem:[%s1689] ss:$9 sm:$0xff] %v1635
      %v1718 = vld [vmem:[#allocation1] sm:$0xff]
      %1719 = vst [vmem:[#allocation1] ss:$9 sm:$0xff] %v1637
      %1720 = vst [vmem:[%s1677] ss:$9 sm:$0xff] %v1638
      %1721 = vst [vmem:[%s1679] ss:$9 sm:$0xff] %v1639
      %1722 = vst [vmem:[%s1681] ss:$9 sm:$0xff] %v1640
      %1723 = vst [vmem:[%s1683] ss:$9 sm:$0xff] %v1578
      %1724 = vst [vmem:[%s1685] ss:$9 sm:$0xff] %v1641
      %1725 = vst [vmem:[%s1687] ss:$9 sm:$0xff] %v1642
      %1726 = vst [vmem:[%s1689] ss:$9 sm:$0xff] %v1643
      %v1727 = vld [vmem:[#allocation1] sm:$0xff]
      %1728 = vst [vmem:[#allocation1] ss:$9 sm:$0xff] %v1645
      %1729 = vst [vmem:[%s1677] ss:$9 sm:$0xff] %v1646
      %1730 = vst [vmem:[%s1679] ss:$9 sm:$0xff] %v1647
      %1731 = vst [vmem:[%s1681] ss:$9 sm:$0xff] %v1581
      %1732 = vst [vmem:[%s1683] ss:$9 sm:$0xff] %v1648
      %1733 = vst [vmem:[%s1685] ss:$9 sm:$0xff] %v1649
      %1734 = vst [vmem:[%s1687] ss:$9 sm:$0xff] %v1650
      %1735 = vst [vmem:[%s1689] ss:$9 sm:$0xff] %v1651
      %v1736 = vld [vmem:[#allocation1] sm:$0xff]
      %1737 = vst [vmem:[#allocation1] ss:$9 sm:$0xff] %v1653
      %1738 = vst [vmem:[%s1677] ss:$9 sm:$0xff] %v1654
      %1739 = vst [vmem:[%s1679] ss:$9 sm:$0xff] %v1584
      %1740 = vst [vmem:[%s1681] ss:$9 sm:$0xff] %v1655
      %1741 = vst [vmem:[%s1683] ss:$9 sm:$0xff] %v1656
      %1742 = vst [vmem:[%s1685] ss:$9 sm:$0xff] %v1657
      %1743 = vst [vmem:[%s1687] ss:$9 sm:$0xff] %v1658
      %1744 = vst [vmem:[%s1689] ss:$9 sm:$0xff] %v1659
      %v1745 = vld [vmem:[#allocation1] sm:$0xff]
      %1746 = vst [vmem:[#allocation1] ss:$9 sm:$0xff] %v1661
      %1747 = vst [vmem:[%s1677] ss:$9 sm:$0xff] %v1587
      %1748 = vst [vmem:[%s1679] ss:$9 sm:$0xff] %v1662
      %1749 = vst [vmem:[%s1681] ss:$9 sm:$0xff] %v1663
      %1750 = vst [vmem:[%s1683] ss:$9 sm:$0xff] %v1664
      %1751 = vst [vmem:[%s1685] ss:$9 sm:$0xff] %v1665
      %1752 = vst [vmem:[%s1687] ss:$9 sm:$0xff] %v1666
      %1753 = vst [vmem:[%s1689] ss:$9 sm:$0xff] %v1667
      %v1754 = vld [vmem:[#allocation1] sm:$0xff]
      %1763 = vst [vmem:[#allocation1] ss:$9 sm:$0xff] %v1606
      %s1764 = scalar_lea.vmem [#allocation1], 1
      %1765 = vst [vmem:[%s1764] ss:$9 sm:$0xff] %v1607
      %s1766 = scalar_lea.vmem [#allocation1], 2
      %1767 = vst [vmem:[%s1766] ss:$9 sm:$0xff] %v1608
      %s1768 = scalar_lea.vmem [#allocation1], 3
      %1769 = vst [vmem:[%s1768] ss:$9 sm:$0xff] %v1609
      %s1770 = scalar_lea.vmem [#allocation1], 4
      %1771 = vst [vmem:[%s1770] ss:$9 sm:$0xff] %v1610
      %s1772 = scalar_lea.vmem [#allocation1], 5
      %1773 = vst [vmem:[%s1772] ss:$9 sm:$0xff] %v1611
      %s1774 = scalar_lea.vmem [#allocation1], 6
      %1775 = vst [vmem:[%s1774] ss:$9 sm:$0xff] %v1612
      %s1776 = scalar_lea.vmem [#allocation1], 7
      %1777 = vst [vmem:[%s1776] ss:$9 sm:$0xff] %v1566
      %v1778 = vld [vmem:[#allocation1] sm:$0xff]
      %1779 = vst [vmem:[#allocation1] ss:$9 sm:$0xff] %v1614
      %1780 = vst [vmem:[%s1764] ss:$9 sm:$0xff] %v1615
      %1781 = vst [vmem:[%s1766] ss:$9 sm:$0xff] %v1616
      %1782 = vst [vmem:[%s1768] ss:$9 sm:$0xff] %v1617
      %1783 = vst [vmem:[%s1770] ss:$9 sm:$0xff] %v1618
      %1784 = vst [vmem:[%s1772] ss:$9 sm:$0xff] %v1619
      %1785 = vst [vmem:[%s1774] ss:$9 sm:$0xff] %v1569
      %1786 = vst [vmem:[%s1776] ss:$9 sm:$0xff] %v1620
      %v1787 = vld [vmem:[#allocation1] sm:$0xff]
      %1788 = vst [vmem:[#allocation1] ss:$9 sm:$0xff] %v1622
      %1789 = vst [vmem:[%s1764] ss:$9 sm:$0xff] %v1623
      %1790 = vst [vmem:[%s1766] ss:$9 sm:$0xff] %v1624
      %1791 = vst [vmem:[%s1768] ss:$9 sm:$0xff] %v1625
      %1792 = vst [vmem:[%s1770] ss:$9 sm:$0xff] %v1626
      %1793 = vst [vmem:[%s1772] ss:$9 sm:$0xff] %v1572
      %1794 = vst [vmem:[%s1774] ss:$9 sm:$0xff] %v1627
      %1795 = vst [vmem:[%s1776] ss:$9 sm:$0xff] %v1628
      %v1796 = vld [vmem:[#allocation1] sm:$0xff]
      %1797 = vst [vmem:[#allocation1] ss:$9 sm:$0xff] %v1630
      %1798 = vst [vmem:[%s1764] ss:$9 sm:$0xff] %v1631
      %1799 = vst [vmem:[%s1766] ss:$9 sm:$0xff] %v1632
      %1800 = vst [vmem:[%s1768] ss:$9 sm:$0xff] %v1633
      %1801 = vst [vmem:[%s1770] ss:$9 sm:$0xff] %v1575
      %1802 = vst [vmem:[%s1772] ss:$9 sm:$0xff] %v1634
      %1803 = vst [vmem:[%s1774] ss:$9 sm:$0xff] %v1635
      %1804 = vst [vmem:[%s1776] ss:$9 sm:$0xff] %v1636
      %v1805 = vld [vmem:[#allocation1] sm:$0xff]
      %1806 = vst [vmem:[#allocation1] ss:$9 sm:$0xff] %v1638
      %1807 = vst [vmem:[%s1764] ss:$9 sm:$0xff] %v1639
      %1808 = vst [vmem:[%s1766] ss:$9 sm:$0xff] %v1640
      %1809 = vst [vmem:[%s1768] ss:$9 sm:$0xff] %v1578
      %1810 = vst [vmem:[%s1770] ss:$9 sm:$0xff] %v1641
      %1811 = vst [vmem:[%s1772] ss:$9 sm:$0xff] %v1642
      %1812 = vst [vmem:[%s1774] ss:$9 sm:$0xff] %v1643
      %1813 = vst [vmem:[%s1776] ss:$9 sm:$0xff] %v1644
      %v1814 = vld [vmem:[#allocation1] sm:$0xff]
      %1815 = vst [vmem:[#allocation1] ss:$9 sm:$0xff] %v1646
      %1816 = vst [vmem:[%s1764] ss:$9 sm:$0xff] %v1647
      %1817 = vst [vmem:[%s1766] ss:$9 sm:$0xff] %v1581
      %1818 = vst [vmem:[%s1768] ss:$9 sm:$0xff] %v1648
      %1819 = vst [vmem:[%s1770] ss:$9 sm:$0xff] %v1649
      %1820 = vst [vmem:[%s1772] ss:$9 sm:$0xff] %v1650
      %1821 = vst [vmem:[%s1774] ss:$9 sm:$0xff] %v1651
      %1822 = vst [vmem:[%s1776] ss:$9 sm:$0xff] %v1652
      %v1823 = vld [vmem:[#allocation1] sm:$0xff]
      %1824 = vst [vmem:[#allocation1] ss:$9 sm:$0xff] %v1654
      %1825 = vst [vmem:[%s1764] ss:$9 sm:$0xff] %v1584
      %1826 = vst [vmem:[%s1766] ss:$9 sm:$0xff] %v1655
      %1827 = vst [vmem:[%s1768] ss:$9 sm:$0xff] %v1656
      %1828 = vst [vmem:[%s1770] ss:$9 sm:$0xff] %v1657
      %1829 = vst [vmem:[%s1772] ss:$9 sm:$0xff] %v1658
      %1830 = vst [vmem:[%s1774] ss:$9 sm:$0xff] %v1659
      %1831 = vst [vmem:[%s1776] ss:$9 sm:$0xff] %v1660
      %v1832 = vld [vmem:[#allocation1] sm:$0xff]
      %1833 = vst [vmem:[#allocation1] ss:$9 sm:$0xff] %v1587
      %1834 = vst [vmem:[%s1764] ss:$9 sm:$0xff] %v1662
      %1835 = vst [vmem:[%s1766] ss:$9 sm:$0xff] %v1663
      %1836 = vst [vmem:[%s1768] ss:$9 sm:$0xff] %v1664
      %1837 = vst [vmem:[%s1770] ss:$9 sm:$0xff] %v1665
      %1838 = vst [vmem:[%s1772] ss:$9 sm:$0xff] %v1666
      %1839 = vst [vmem:[%s1774] ss:$9 sm:$0xff] %v1667
      %1840 = vst [vmem:[%s1776] ss:$9 sm:$0xff] %v1668
      %v1841 = vld [vmem:[#allocation1] sm:$0xff]
      %1850 = vst [vmem:[#allocation1] ss:$9 sm:$0xff] %v1613
      %s1851 = scalar_lea.vmem [#allocation1], 1
      %1852 = vst [vmem:[%s1851] ss:$9 sm:$0xff] %v1614
      %s1853 = scalar_lea.vmem [#allocation1], 2
      %1854 = vst [vmem:[%s1853] ss:$9 sm:$0xff] %v1615
      %s1855 = scalar_lea.vmem [#allocation1], 3
      %1856 = vst [vmem:[%s1855] ss:$9 sm:$0xff] %v1616
      %s1857 = scalar_lea.vmem [#allocation1], 4
      %1858 = vst [vmem:[%s1857] ss:$9 sm:$0xff] %v1617
      %s1859 = scalar_lea.vmem [#allocation1], 5
      %1860 = vst [vmem:[%s1859] ss:$9 sm:$0xff] %v1618
      %s1861 = scalar_lea.vmem [#allocation1], 6
      %1862 = vst [vmem:[%s1861] ss:$9 sm:$0xff] %v1619
      %s1863 = scalar_lea.vmem [#allocation1], 7
      %1864 = vst [vmem:[%s1863] ss:$9 sm:$0xff] %v1569
      %v1865 = vld [vmem:[#allocation1] sm:$0xff]
      %1866 = vst [vmem:[#allocation1] ss:$9 sm:$0xff] %v1621
      %1867 = vst [vmem:[%s1851] ss:$9 sm:$0xff] %v1622
      %1868 = vst [vmem:[%s1853] ss:$9 sm:$0xff] %v1623
      %1869 = vst [vmem:[%s1855] ss:$9 sm:$0xff] %v1624
      %1870 = vst [vmem:[%s1857] ss:$9 sm:$0xff] %v1625
      %1871 = vst [vmem:[%s1859] ss:$9 sm:$0xff] %v1626
      %1872 = vst [vmem:[%s1861] ss:$9 sm:$0xff] %v1572
      %1873 = vst [vmem:[%s1863] ss:$9 sm:$0xff] %v1627
      %v1874 = vld [vmem:[#allocation1] sm:$0xff]
      %1875 = vst [vmem:[#allocation1] ss:$9 sm:$0xff] %v1629
      %1876 = vst [vmem:[%s1851] ss:$9 sm:$0xff] %v1630
      %1877 = vst [vmem:[%s1853] ss:$9 sm:$0xff] %v1631
      %1878 = vst [vmem:[%s1855] ss:$9 sm:$0xff] %v1632
      %1879 = vst [vmem:[%s1857] ss:$9 sm:$0xff] %v1633
      %1880 = vst [vmem:[%s1859] ss:$9 sm:$0xff] %v1575
      %1881 = vst [vmem:[%s1861] ss:$9 sm:$0xff] %v1634
      %1882 = vst [vmem:[%s1863] ss:$9 sm:$0xff] %v1635
      %v1883 = vld [vmem:[#allocation1] sm:$0xff]
      %1884 = vst [vmem:[#allocation1] ss:$9 sm:$0xff] %v1637
      %1885 = vst [vmem:[%s1851] ss:$9 sm:$0xff] %v1638
      %1886 = vst [vmem:[%s1853] ss:$9 sm:$0xff] %v1639
      %1887 = vst [vmem:[%s1855] ss:$9 sm:$0xff] %v1640
      %1888 = vst [vmem:[%s1857] ss:$9 sm:$0xff] %v1578
      %1889 = vst [vmem:[%s1859] ss:$9 sm:$0xff] %v1641
      %1890 = vst [vmem:[%s1861] ss:$9 sm:$0xff] %v1642
      %1891 = vst [vmem:[%s1863] ss:$9 sm:$0xff] %v1643
      %v1892 = vld [vmem:[#allocation1] sm:$0xff]
      %1893 = vst [vmem:[#allocation1] ss:$9 sm:$0xff] %v1645
      %1894 = vst [vmem:[%s1851] ss:$9 sm:$0xff] %v1646
      %1895 = vst [vmem:[%s1853] ss:$9 sm:$0xff] %v1647
      %1896 = vst [vmem:[%s1855] ss:$9 sm:$0xff] %v1581
      %1897 = vst [vmem:[%s1857] ss:$9 sm:$0xff] %v1648
      %1898 = vst [vmem:[%s1859] ss:$9 sm:$0xff] %v1649
      %1899 = vst [vmem:[%s1861] ss:$9 sm:$0xff] %v1650
      %1900 = vst [vmem:[%s1863] ss:$9 sm:$0xff] %v1651
      %v1901 = vld [vmem:[#allocation1] sm:$0xff]
      %1902 = vst [vmem:[#allocation1] ss:$9 sm:$0xff] %v1653
      %1903 = vst [vmem:[%s1851] ss:$9 sm:$0xff] %v1654
      %1904 = vst [vmem:[%s1853] ss:$9 sm:$0xff] %v1584
      %1905 = vst [vmem:[%s1855] ss:$9 sm:$0xff] %v1655
      %1906 = vst [vmem:[%s1857] ss:$9 sm:$0xff] %v1656
      %1907 = vst [vmem:[%s1859] ss:$9 sm:$0xff] %v1657
      %1908 = vst [vmem:[%s1861] ss:$9 sm:$0xff] %v1658
      %1909 = vst [vmem:[%s1863] ss:$9 sm:$0xff] %v1659
      %v1910 = vld [vmem:[#allocation1] sm:$0xff]
      %1911 = vst [vmem:[#allocation1] ss:$9 sm:$0xff] %v1661
      %1912 = vst [vmem:[%s1851] ss:$9 sm:$0xff] %v1587
      %1913 = vst [vmem:[%s1853] ss:$9 sm:$0xff] %v1662
      %1914 = vst [vmem:[%s1855] ss:$9 sm:$0xff] %v1663
      %1915 = vst [vmem:[%s1857] ss:$9 sm:$0xff] %v1664
      %1916 = vst [vmem:[%s1859] ss:$9 sm:$0xff] %v1665
      %1917 = vst [vmem:[%s1861] ss:$9 sm:$0xff] %v1666
      %1918 = vst [vmem:[%s1863] ss:$9 sm:$0xff] %v1667
      %v1919 = vld [vmem:[#allocation1] sm:$0xff]
      %1920 = vst [vmem:[#allocation1] ss:$9 sm:$0xff] %v1590
      %1921 = vst [vmem:[%s1851] ss:$9 sm:$0xff] %v1669
      %1922 = vst [vmem:[%s1853] ss:$9 sm:$0xff] %v1670
      %1923 = vst [vmem:[%s1855] ss:$9 sm:$0xff] %v1671
      %1924 = vst [vmem:[%s1857] ss:$9 sm:$0xff] %v1672
      %1925 = vst [vmem:[%s1859] ss:$9 sm:$0xff] %v1673
      %1926 = vst [vmem:[%s1861] ss:$9 sm:$0xff] %v1674
      %1927 = vst [vmem:[%s1863] ss:$9 sm:$0xff] %v1675
      %v1928 = vld [vmem:[#allocation1] sm:$0xff]
      %1937 = vst [vmem:[#allocation1] ss:$9 sm:$0xff] %v1614
      %s1938 = scalar_lea.vmem [#allocation1], 1
      %1939 = vst [vmem:[%s1938] ss:$9 sm:$0xff] %v1615
      %s1940 = scalar_lea.vmem [#allocation1], 2
      %1941 = vst [vmem:[%s1940] ss:$9 sm:$0xff] %v1616
      %s1942 = scalar_lea.vmem [#allocation1], 3
      %1943 = vst [vmem:[%s1942] ss:$9 sm:$0xff] %v1617
      %s1944 = scalar_lea.vmem [#allocation1], 4
      %1945 = vst [vmem:[%s1944] ss:$9 sm:$0xff] %v1618
      %s1946 = scalar_lea.vmem [#allocation1], 5
      %1947 = vst [vmem:[%s1946] ss:$9 sm:$0xff] %v1619
      %s1948 = scalar_lea.vmem [#allocation1], 6
      %1949 = vst [vmem:[%s1948] ss:$9 sm:$0xff] %v1569
      %s1950 = scalar_lea.vmem [#allocation1], 7
      %1951 = vst [vmem:[%s1950] ss:$9 sm:$0xff] %v1620
      %v1952 = vld [vmem:[#allocation1] sm:$0xff]
      %1953 = vst [vmem:[#allocation1] ss:$9 sm:$0xff] %v1622
      %1954 = vst [vmem:[%s1938] ss:$9 sm:$0xff] %v1623
      %1955 = vst [vmem:[%s1940] ss:$9 sm:$0xff] %v1624
      %1956 = vst [vmem:[%s1942] ss:$9 sm:$0xff] %v1625
      %1957 = vst [vmem:[%s1944] ss:$9 sm:$0xff] %v1626
      %1958 = vst [vmem:[%s1946] ss:$9 sm:$0xff] %v1572
      %1959 = vst [vmem:[%s1948] ss:$9 sm:$0xff] %v1627
      %1960 = vst [vmem:[%s1950] ss:$9 sm:$0xff] %v1628
      %v1961 = vld [vmem:[#allocation1] sm:$0xff]
      %1962 = vst [vmem:[#allocation1] ss:$9 sm:$0xff] %v1630
      %1963 = vst [vmem:[%s1938] ss:$9 sm:$0xff] %v1631
      %1964 = vst [vmem:[%s1940] ss:$9 sm:$0xff] %v1632
      %1965 = vst [vmem:[%s1942] ss:$9 sm:$0xff] %v1633
      %1966 = vst [vmem:[%s1944] ss:$9 sm:$0xff] %v1575
      %1967 = vst [vmem:[%s1946] ss:$9 sm:$0xff] %v1634
      %1968 = vst [vmem:[%s1948] ss:$9 sm:$0xff] %v1635
      %1969 = vst [vmem:[%s1950] ss:$9 sm:$0xff] %v1636
      %v1970 = vld [vmem:[#allocation1] sm:$0xff]
      %1971 = vst [vmem:[#allocation1] ss:$9 sm:$0xff] %v1638
      %1972 = vst [vmem:[%s1938] ss:$9 sm:$0xff] %v1639
      %1973 = vst [vmem:[%s1940] ss:$9 sm:$0xff] %v1640
      %1974 = vst [vmem:[%s1942] ss:$9 sm:$0xff] %v1578
      %1975 = vst [vmem:[%s1944] ss:$9 sm:$0xff] %v1641
      %1976 = vst [vmem:[%s1946] ss:$9 sm:$0xff] %v1642
      %1977 = vst [vmem:[%s1948] ss:$9 sm:$0xff] %v1643
      %1978 = vst [vmem:[%s1950] ss:$9 sm:$0xff] %v1644
      %v1979 = vld [vmem:[#allocation1] sm:$0xff]
      %1980 = vst [vmem:[#allocation1] ss:$9 sm:$0xff] %v1646
      %1981 = vst [vmem:[%s1938] ss:$9 sm:$0xff] %v1647
      %1982 = vst [vmem:[%s1940] ss:$9 sm:$0xff] %v1581
      %1983 = vst [vmem:[%s1942] ss:$9 sm:$0xff] %v1648
      %1984 = vst [vmem:[%s1944] ss:$9 sm:$0xff] %v1649
      %1985 = vst [vmem:[%s1946] ss:$9 sm:$0xff] %v1650
      %1986 = vst [vmem:[%s1948] ss:$9 sm:$0xff] %v1651
      %1987 = vst [vmem:[%s1950] ss:$9 sm:$0xff] %v1652
      %v1988 = vld [vmem:[#allocation1] sm:$0xff]
      %1989 = vst [vmem:[#allocation1] ss:$9 sm:$0xff] %v1654
      %1990 = vst [vmem:[%s1938] ss:$9 sm:$0xff] %v1584
      %1991 = vst [vmem:[%s1940] ss:$9 sm:$0xff] %v1655
      %1992 = vst [vmem:[%s1942] ss:$9 sm:$0xff] %v1656
      %1993 = vst [vmem:[%s1944] ss:$9 sm:$0xff] %v1657
      %1994 = vst [vmem:[%s1946] ss:$9 sm:$0xff] %v1658
      %1995 = vst [vmem:[%s1948] ss:$9 sm:$0xff] %v1659
      %1996 = vst [vmem:[%s1950] ss:$9 sm:$0xff] %v1660
      %v1997 = vld [vmem:[#allocation1] sm:$0xff]
      %1998 = vst [vmem:[#allocation1] ss:$9 sm:$0xff] %v1587
      %1999 = vst [vmem:[%s1938] ss:$9 sm:$0xff] %v1662
      %2000 = vst [vmem:[%s1940] ss:$9 sm:$0xff] %v1663
      %2001 = vst [vmem:[%s1942] ss:$9 sm:$0xff] %v1664
      %2002 = vst [vmem:[%s1944] ss:$9 sm:$0xff] %v1665
      %2003 = vst [vmem:[%s1946] ss:$9 sm:$0xff] %v1666
      %2004 = vst [vmem:[%s1948] ss:$9 sm:$0xff] %v1667
      %2005 = vst [vmem:[%s1950] ss:$9 sm:$0xff] %v1668
      %v2006 = vld [vmem:[#allocation1] sm:$0xff]
      %2007 = vst [vmem:[#allocation1] ss:$9 sm:$0xff] %v1669
      %2008 = vst [vmem:[%s1938] ss:$9 sm:$0xff] %v1670
      %2009 = vst [vmem:[%s1940] ss:$9 sm:$0xff] %v1671
      %2010 = vst [vmem:[%s1942] ss:$9 sm:$0xff] %v1672
      %2011 = vst [vmem:[%s1944] ss:$9 sm:$0xff] %v1673
      %2012 = vst [vmem:[%s1946] ss:$9 sm:$0xff] %v1674
      %2013 = vst [vmem:[%s1948] ss:$9 sm:$0xff] %v1675
      %2014 = vst [vmem:[%s1950] ss:$9 sm:$0xff] %v1593
      %v2015 = vld [vmem:[#allocation1] sm:$0xff]
      %vm2024 = vcmask 31744
      %v2025 = vsel %vm2024, %v1691, %v1778
      %v2026 = vsel %vm2024, %v1700, %v1787
      %v2027 = vsel %vm2024, %v1709, %v1796
      %v2028 = vsel %vm2024, %v1718, %v1805
      %v2029 = vsel %vm2024, %v1727, %v1814
      %v2030 = vsel %vm2024, %v1736, %v1823
      %v2031 = vsel %vm2024, %v1745, %v1832
      %v2032 = vsel %vm2024, %v1754, %v1841
      %v2033 = vsel %vm541, %v2025, %v1865
      %v2034 = vsel %vm541, %v2026, %v1874
      %v2035 = vsel %vm541, %v2027, %v1883
      %v2036 = vsel %vm541, %v2028, %v1892
      %v2037 = vsel %vm541, %v2029, %v1901
      %v2038 = vsel %vm541, %v2030, %v1910
      %v2039 = vsel %vm541, %v2031, %v1919
      %v2040 = vsel %vm541, %v2032, %v1928
      %vm2041 = vcmask 97280
      %v2042 = vsel %vm2041, %v2033, %v1952
      %v2043 = vsel %vm2041, %v2034, %v1961
      %v2044 = vsel %vm2041, %v2035, %v1970
      %v2045 = vsel %vm2041, %v2036, %v1979
      %v2046 = vsel %vm2041, %v2037, %v1988
      %v2047 = vsel %vm2041, %v2038, %v1997
      %v2048 = vsel %vm2041, %v2039, %v2006
      %v2049 = vsel %vm2041, %v2040, %v2015
      %2050 = vst.msk [vmem:[%s235] sm:$0xff] %vm432, %v2042
      %2051 = vst.msk [vmem:[%s235 + $0x8] sm:$0xff] %vm432, %v2043
      %2052 = vst.msk [vmem:[%s235 + $0x10] sm:$0xff] %vm432, %v2044
      %2053 = vst.msk [vmem:[%s235 + $0x18] sm:$0xff] %vm432, %v2045
      %2054 = vst.msk [vmem:[%s235 + $0x20] sm:$0xff] %vm432, %v2046
      %2055 = vst.msk [vmem:[%s235 + $0x28] sm:$0xff] %vm432, %v2047
      %2056 = vst.msk [vmem:[%s235 + $0x30] sm:$0xff] %vm432, %v2048
      %2057 = vst.msk [vmem:[%s235 + $0x38] sm:$0xff] %vm432, %v2049
      %v2058 = vsel %vm432, %v2042, 0.0
      %v2059 = vsel %vm432, %v2043, 0.0
      %v2060 = vadd.f32 %v2058, %v2059
      %v2061 = vsel %vm432, %v2044, 0.0
      %v2062 = vadd.f32 %v2060, %v2061
      %v2063 = vsel %vm432, %v2045, 0.0
      %v2064 = vadd.f32 %v2062, %v2063
      %v2065 = vsel %vm432, %v2046, 0.0
      %v2066 = vadd.f32 %v2064, %v2065
      %v2067 = vsel %vm432, %v2047, 0.0
      %v2068 = vadd.f32 %v2066, %v2067
      %v2069 = vsel %vm432, %v2048, 0.0
      %v2070 = vadd.f32 %v2068, %v2069
      %v2071 = vsel %vm432, %v2049, 0.0
      %v2072 = vadd.f32 %v2070, %v2071
      %v2073 = vrot.slane %v2072, 4
      %v2074 = vadd.f32 %v2072, %v2073
      %v2075 = vrot.slane %v2074, 2
      %v2076 = vadd.f32 %v2074, %v2075
      %v2077 = vrot.slane %v2076, 1
      %v2078 = vadd.f32 %v2076, %v2077
      %vm2079 = vcmask 122880
      %2080 = vst.msk [vmem:[%s238] sm:$0x1] %vm2079, %v2078
      %v2081 = vmul.f32 %v2042, %v2042
      %v2082 = vmul.f32 %v2043, %v2043
      %v2083 = vmul.f32 %v2044, %v2044
      %v2084 = vmul.f32 %v2045, %v2045
      %v2085 = vmul.f32 %v2046, %v2046
      %v2086 = vmul.f32 %v2047, %v2047
      %v2087 = vmul.f32 %v2048, %v2048
      %v2088 = vmul.f32 %v2049, %v2049
      %v2089 = vsel %vm432, %v2081, 0.0
      %v2090 = vsel %vm432, %v2082, 0.0
      %v2091 = vadd.f32 %v2089, %v2090
      %v2092 = vsel %vm432, %v2083, 0.0
      %v2093 = vadd.f32 %v2091, %v2092
      %v2094 = vsel %vm432, %v2084, 0.0
      %v2095 = vadd.f32 %v2093, %v2094
      %v2096 = vsel %vm432, %v2085, 0.0
      %v2097 = vadd.f32 %v2095, %v2096
      %v2098 = vsel %vm432, %v2086, 0.0
      %v2099 = vadd.f32 %v2097, %v2098
      %v2100 = vsel %vm432, %v2087, 0.0
      %v2101 = vadd.f32 %v2099, %v2100
      %v2102 = vsel %vm432, %v2088, 0.0
      %v2103 = vadd.f32 %v2101, %v2102
      %v2104 = vrot.slane %v2103, 4
      %v2105 = vadd.f32 %v2103, %v2104
      %v2106 = vrot.slane %v2105, 2
      %v2107 = vadd.f32 %v2105, %v2106
      %v2108 = vrot.slane %v2107, 1
      %v2109 = vadd.f32 %v2107, %v2108
      %2110 = vst.msk [vmem:[%s241] sm:$0x1] %vm2079, %v2109
      %p2111 = scmp.lt.s32.totalorder %s17, 1
      %s2112 = scalar_select %p2111, %s17, 1
      %s2113 = smul.addr %s2112, 8
      %s2114 = smul.addr %s2113, 8
      %s2115 = scalar_lea.vmem %s3, %s2114
      %p2116 = scmp.lt.s32.totalorder %s17, 1
      %s2117 = scalar_select %p2116, %s17, 1
      %s2118 = scalar_lea.vmem %s4, %s2117
      %p2119 = scmp.lt.s32.totalorder %s17, 1
      %s2120 = scalar_select %p2119, %s17, 1
      %s2121 = scalar_lea.vmem %s5, %s2120
      // Predicated region
      $region33: #{unet_innermost_forward.2} parent=31 // pred_check
        %p2122 = pneg %p103
      $region34: #{unet_innermost_forward.2} parent=31 // pred_check_branch
        %2124 = sbr.rel (%p2122) target = $region36
      $region35: #{unet_innermost_forward.2} parent=31 // pred_region
        _
      $region36: #{unet_innermost_forward.2} parent=31 // pred_fallthru
        _
      // Predicated region
      $region37: #{unet_innermost_forward.2} parent=31 // pred_check
        %p2125 = pneg %p129
      $region38: #{unet_innermost_forward.2} parent=31 // pred_check_branch
        %2127 = sbr.rel (%p2125) target = $region40
      $region39: #{unet_innermost_forward.2} parent=31 // pred_region
        _
      $region40: #{unet_innermost_forward.2} parent=31 // pred_fallthru
        _
      // Predicated region
      $region41: #{unet_innermost_forward.2} parent=31 // pred_check
        %p2128 = pneg %p155
      $region42: #{unet_innermost_forward.2} parent=31 // pred_check_branch
        %2130 = sbr.rel (%p2128) target = $region44
      $region43: #{unet_innermost_forward.2} parent=31 // pred_region
        _
      $region44: #{unet_innermost_forward.2} parent=31 // pred_fallthru
        _
    $region32: #{unet_innermost_forward.2} parent=5 // pred_fallthru
      _
    %p2131 = scmp.le.s32.totalorder 2, %s12
    // Predicated region
    $region45: #{unet_innermost_forward.2} parent=5 // pred_check
      %p2132 = pneg %p2131
    $region46: #{unet_innermost_forward.2} parent=5 // pred_check_branch
      %2134 = sbr.rel (%p2132) target = $region48
    $region47: #{unet_innermost_forward.2} parent=5 // pred_region
      %s2135 = ssub.s32 %s12, 2
      // Predicated region
      $region49: #{unet_innermost_forward.2} parent=47 // pred_check
        %p2136 = pneg %p109
      $region50: #{unet_innermost_forward.2} parent=47 // pred_check_branch
        %2138 = sbr.rel (%p2136) target = $region52
      $region51: #{unet_innermost_forward.2} parent=47 // pred_region
        %p2139 = scmp.lt.s32.totalorder %s18, 1
        %s2140 = scalar_select %p2139, %s18, 1
        %s2141 = smul.addr %s2140, 8
        %s2142 = smul.addr %s2141, 8
        %s2143 = scalar_lea.vmem %s3, %s2142
      $region52: #{unet_innermost_forward.2} parent=47 // pred_fallthru
        _
      // Predicated region
      $region53: #{unet_innermost_forward.2} parent=47 // pred_check
        %p2144 = pneg %p135
      $region54: #{unet_innermost_forward.2} parent=47 // pred_check_branch
        %2146 = sbr.rel (%p2144) target = $region56
      $region55: #{unet_innermost_forward.2} parent=47 // pred_region
        %p2147 = scmp.lt.s32.totalorder %s18, 1
        %s2148 = scalar_select %p2147, %s18, 1
        %s2149 = scalar_lea.vmem %s4, %s2148
      $region56: #{unet_innermost_forward.2} parent=47 // pred_fallthru
        _
      // Predicated region
      $region57: #{unet_innermost_forward.2} parent=47 // pred_check
        %p2150 = pneg %p161
      $region58: #{unet_innermost_forward.2} parent=47 // pred_check_branch
        %2152 = sbr.rel (%p2150) target = $region60
      $region59: #{unet_innermost_forward.2} parent=47 // pred_region
        %p2153 = scmp.lt.s32.totalorder %s18, 1
        %s2154 = scalar_select %p2153, %s18, 1
        %s2155 = scalar_lea.vmem %s5, %s2154
      $region60: #{unet_innermost_forward.2} parent=47 // pred_fallthru
        _
    $region48: #{unet_innermost_forward.2} parent=5 // pred_fallthru
      _
  $region6: #{unet_innermost_forward.2} parent=0 // loop_footer
    %s16 = sadd.s32 1, %s12
  $region7: #{unet_innermost_forward.2} parent=0 // loop_footer_branch
    %11 = sbr.rel target = $region3
  $region8: #{unet_innermost_forward.2} parent=0 // loop_exit
    _

</llo_original>
